<compile_context>
chip_gen: v7x
topology: tpu7x:2x2x1
jax: 0.10.0
libtpu: 0.0.40
codegen_flags: <defaults>
</compile_context>

<pallas_src>
import functools

import jax
import jax.numpy as jnp
from jax.experimental import pallas as pl
from jax.experimental.pallas import tpu as pltpu


# ----------------------------------------------------------------------------
# Fused kernel.  Grid = (num_layers,), sequential.
# Refs (per grid step = per layer):
#   x_ref    (T*Bp, Din)  time-major, batch-padded, flattened input (bf16)
#   wih0_ref (Din, 4H)    layer-0 W_ih^T
#   wihr_ref (H, 4H)      layer-l W_ih^T for l>0 (block max(l-1,0) of stack)
#   whh_ref  (H, 4H)      layer-l W_hh^T
#   bias_ref (1, 4H)      layer-l (b_ih + b_hh), f32
#   wfc_ref  (H, F)       fc2 weight^T
#   bfc_ref  (1, F)       fc2 bias
#   out_ref  (B, F)       final output (written only on the last layer)
#   seq_sc   (T*Bp, H)    previous layer's hidden sequence (persistent, f32)
#   gx_sc    (T*Bp, 4H)   hoisted input projection of current layer (f32)
# Gate order in the packed 4H axis: (i, f, o, g).
# ----------------------------------------------------------------------------
def _fflstm_fused_kernel(x_ref, wih0_ref, wihr_ref, whh_ref, bias_ref,
                         wfc_ref, bfc_ref, out_ref, seq_sc, gx_sc, *, T, Bp):
    layer = pl.program_id(0)
    n_layers = pl.num_programs(0)
    H, H4 = whh_ref.shape
    B_out = out_ref.shape[0]
    bias = bias_ref[...]                                  # (1, 4H) f32

    # ---- (1) hoisted input projection: one flat matmul per layer -----------
    @pl.when(layer == 0)
    def _():
        gx_sc[...] = jnp.dot(x_ref[...], wih0_ref[...],
                             preferred_element_type=jnp.float32) + bias

    @pl.when(layer > 0)
    def _():
        gx_sc[...] = jnp.dot(seq_sc[...].astype(wihr_ref.dtype), wihr_ref[...],
                             preferred_element_type=jnp.float32) + bias

    # ---- (2) recurrence: only h @ W_hh^T stays on the serial path ----------
    w_hh = whh_ref[...]                                   # hoisted (H, 4H)
    write_seq = layer < n_layers - 1                      # last layer: skip

    def step(t, carry):
        h_prev, c_prev = carry                            # (Bp, H) f32
        row = pl.multiple_of(t * Bp, Bp)                  # aligned time slab
        gx_t = gx_sc[pl.ds(row, Bp), :]                   # one aligned load
        z = gx_t + jnp.dot(h_prev.astype(w_hh.dtype), w_hh,
                           preferred_element_type=jnp.float32)   # (Bp, 4H)
        sig = jax.nn.sigmoid(z[:, :3 * H])                # i, f, o in one call
        g_g = jnp.tanh(z[:, 3 * H:])                      # g in one call
        i_g = sig[:, 0 * H:1 * H]
        f_g = sig[:, 1 * H:2 * H]
        o_g = sig[:, 2 * H:3 * H]
        c_new = f_g * c_prev + i_g * g_g
        h_new = o_g * jnp.tanh(c_new)

        @pl.when(write_seq)                               # feeds layer l+1
        def _():
            seq_sc[pl.ds(row, Bp), :] = h_new             # one aligned store
        return h_new, c_new

    zeros = jnp.zeros((Bp, H), jnp.float32)               # h0 = c0 = 0
    h_last, _ = jax.lax.fori_loop(0, T, step, (zeros, zeros),
                                  unroll=True if T <= 32 else 8)

    # ---- (3) FC epilogue on the last layer's final hidden state ------------
    @pl.when(layer == n_layers - 1)
    def _():
        out = jnp.dot(h_last.astype(wfc_ref.dtype), wfc_ref[...],
                      preferred_element_type=jnp.float32) + bfc_ref[...]
        out_ref[...] = out[:B_out, :].astype(out_ref.dtype)


# ----------------------------------------------------------------------------
# Wrapper
# ----------------------------------------------------------------------------
def fflstm_encoder1_forward(params, x):
    """FFLSTMEncoder1 forward: x (B, T, lstm_input_size) -> (B, fc2_size)."""
    wih0, wihr, whh, bias = params["wih0"], params["wihr"], params["whh"], params["b"]
    wfc, bfc = params["wfc"], params["bfc"]

    B, T, d_in = x.shape
    n_layers, H, H4 = whh.shape
    F = wfc.shape[1]
    cdt = wih0.dtype
    itemsize = jnp.dtype(cdt).itemsize
    Bp = ((B + 7) // 8) * 8                       # pad batch to sublane multiple

    # Time-major, batch-padded, flattened input (one-time XLA preprocessing).
    xt = jnp.swapaxes(x.astype(cdt), 0, 1)        # (T, B, Din)
    if Bp != B:
        xt = jnp.pad(xt, ((0, 0), (0, Bp - B), (0, 0)))
    x_flat = xt.reshape(T * Bp, d_in)             # (T*Bp, Din)

    # Real VMEM footprint (inputs counted double-buffered) + margin.
    vmem_bytes = (
        2 * T * Bp * d_in * itemsize              # x
        + 2 * d_in * H4 * itemsize                # wih0
        + 2 * 2 * H * H4 * itemsize               # wihr + whh (double-buffered)
        + 2 * H4 * 4                              # bias
        + 2 * (H * F * itemsize + F * 4)          # fc weights
        + 2 * B * F * 4                           # out
        + T * Bp * H * 4                          # seq_sc
        + T * Bp * H4 * 4                         # gx_sc
    )
    vmem_limit = int(min(max(int(vmem_bytes * 1.3) + (2 << 20), 32 << 20),
                         100 << 20))

    kernel = functools.partial(_fflstm_fused_kernel, T=T, Bp=Bp)

    return pl.pallas_call(
        kernel,
        out_shape=jax.ShapeDtypeStruct((B, F), jnp.float32),
        grid_spec=pltpu.PrefetchScalarGridSpec(
            num_scalar_prefetch=0,
            grid=(n_layers,),
            in_specs=[
                # x: constant block index => loaded once, VMEM-resident.
                pl.BlockSpec((T * Bp, d_in), lambda l: (0, 0)),
                # Layer-0 input weight (no padded rows ever DMA'd).
                pl.BlockSpec((d_in, H4), lambda l: (0, 0)),
                # Layers 1..L-1 input weights; clamp so l=0 prefetches block 0
                # (= layer 1's weight, reused at l=1).
                pl.BlockSpec((None, H, H4),
                             lambda l: (jnp.maximum(l - 1, 0), 0, 0)),
                # Per-layer recurrent weight / bias, double-buffered over l.
                pl.BlockSpec((None, H, H4), lambda l: (l, 0, 0)),
                pl.BlockSpec((None, 1, H4), lambda l: (l, 0, 0)),
                # FC weights: constant index.
                pl.BlockSpec((H, F), lambda l: (0, 0)),
                pl.BlockSpec((1, F), lambda l: (0, 0)),
            ],
            out_specs=pl.BlockSpec((B, F), lambda l: (0, 0)),
            scratch_shapes=[
                pltpu.VMEM((T * Bp, H), jnp.float32),     # seq_sc (inter-layer h)
                pltpu.VMEM((T * Bp, H4), jnp.float32),    # gx_sc (hoisted proj.)
            ],
        ),
        compiler_params=pltpu.CompilerParams(
            # Layer axis must stay sequential: layer l consumes layer l-1's
            # activations carried in VMEM scratch.
            dimension_semantics=("arbitrary",),
            vmem_limit_bytes=vmem_limit,
        ),
    )(x_flat, wih0, wihr, whh, bias, wfc, bfc)


# ----------------------------------------------------------------------------
# Parameter init (PyTorch-style uniform).  Weights are pre-transposed; gate
# columns are packed in (i, f, o, g) order (NOTE: PyTorch nn.LSTM packs
# (i, f, g, o) -- importing a torch checkpoint requires permuting the last two
# gate blocks).  bias = b_ih + b_hh, kept f32.
# ----------------------------------------------------------------------------
def init_params(key, lstm_input_size, lstm_hidden_size, lstm_num_layers,
                fc2_size, compute_dtype=jnp.bfloat16):
    H = lstm_hidden_size
    H4 = 4 * H
    bound = 1.0 / (H ** 0.5)
    wih0 = None
    wihr_list, whh_list, bias_list = [], [], []
    for layer in range(lstm_num_layers):
        d_in = lstm_input_size if layer == 0 else H
        key, k1, k2, k3, k4 = jax.random.split(key, 5)
        w_ih = jax.random.uniform(k1, (d_in, H4), jnp.float32, -bound, bound)
        w_hh = jax.random.uniform(k2, (H, H4), jnp.float32, -bound, bound)
        b_ih = jax.random.uniform(k3, (H4,), jnp.float32, -bound, bound)
        b_hh = jax.random.uniform(k4, (H4,), jnp.float32, -bound, bound)
        if layer == 0:
            wih0 = w_ih
        else:
            wihr_list.append(w_ih)
        whh_list.append(w_hh)
        bias_list.append((b_ih + b_hh)[None, :])
    if not wihr_list:                               # L == 1: dummy, never used
        wihr_list.append(jnp.zeros((H, H4), jnp.float32))
    key, k1, k2 = jax.random.split(key, 3)
    w_fc = jax.random.uniform(k1, (H, fc2_size), jnp.float32, -bound, bound)
    b_fc = jax.random.uniform(k2, (fc2_size,), jnp.float32, -bound, bound)
    return {
        "wih0": wih0.astype(compute_dtype),               # (Din, 4H)
        "wihr": jnp.stack(wihr_list).astype(compute_dtype),  # (max(L-1,1), H, 4H)
        "whh":  jnp.stack(whh_list).astype(compute_dtype),   # (L, H, 4H)
        "b":    jnp.stack(bias_list),                         # (L, 1, 4H) f32
        "wfc":  w_fc.astype(compute_dtype),                   # (H, F)
        "bfc":  b_fc[None, :],                                # (1, F) f32
    }


# ----------------------------------------------------------------------------
# Pure-JAX reference (lax.scan), f32 math, same (bf16-rounded) weights and
# same (i, f, o, g) gate packing.
# ----------------------------------------------------------------------------
def _reference_forward(params, x):
    wih0 = params["wih0"].astype(jnp.float32)
    wihr = params["wihr"].astype(jnp.float32)
    whh = params["whh"].astype(jnp.float32)
    bias = params["b"].astype(jnp.float32)
    B, T, _ = x.shape
    L, H, H4 = whh.shape
    h_seq = x.astype(params["wih0"].dtype).astype(jnp.float32)   # (B, T, d)
    for layer in range(L):
        w_in = wih0 if layer == 0 else wihr[layer - 1]
        w_h, b_l = whh[layer], bias[layer]

        def step(carry, x_t, w_in=w_in, w_h=w_h, b_l=b_l):
            h, c = carry
            z = x_t @ w_in + h @ w_h + b_l
            i = jax.nn.sigmoid(z[:, 0 * H:1 * H])
            f = jax.nn.sigmoid(z[:, 1 * H:2 * H])
            o = jax.nn.sigmoid(z[:, 2 * H:3 * H])
            g = jnp.tanh(z[:, 3 * H:4 * H])
            c = f * c + i * g
            h = o * jnp.tanh(c)
            return (h, c), h

        init = (jnp.zeros((B, H), jnp.float32), jnp.zeros((B, H), jnp.float32))
        _, hs = jax.lax.scan(step, init, jnp.swapaxes(h_seq, 0, 1))
        h_seq = jnp.swapaxes(hs, 0, 1)                            # (B, T, H)
    h_last = h_seq[:, -1, :]
    return (h_last @ params["wfc"].astype(jnp.float32)
            + params["bfc"].astype(jnp.float32))


if __name__ == "__main__":
    # Small deterministic config consistent with the module's forward.
    batch, seq_len = 2, 8
    lstm_input_size, lstm_hidden_size, lstm_num_layers, fc2_size = 16, 32, 2, 10

    key = jax.random.PRNGKey(0)
    key, xkey = jax.random.split(key)
    x = jax.random.normal(xkey, (batch, seq_len, lstm_input_size), jnp.float32)

    params = init_params(key, lstm_input_size, lstm_hidden_size,
                         lstm_num_layers, fc2_size)

    fwd = jax.jit(fflstm_encoder1_forward)
    out = fwd(params, x)
    jax.block_until_ready(out)

    assert out.shape == (batch, fc2_size), out.shape
    ref = _reference_forward(params, x)
    max_err = float(jnp.max(jnp.abs(out - ref)))
    assert bool(jnp.allclose(out, ref, rtol=2e-2, atol=2e-2)), (
        f"kernel/reference mismatch: max abs err = {max_err}")
    print("KERNEL_OK")
</pallas_src>

<mosaic_0001>
module attributes {stable_mosaic.version = 11 : i64} {
  func.func @_fflstm_fused_kernel(%arg0: i32, %arg1: memref<64x16xbf16, #tpu.memory_space<vmem>>, %arg2: memref<16x128xbf16, #tpu.memory_space<vmem>>, %arg3: memref<1x32x128xbf16, #tpu.memory_space<vmem>>, %arg4: memref<1x32x128xbf16, #tpu.memory_space<vmem>>, %arg5: memref<1x1x128xf32, #tpu.memory_space<vmem>>, %arg6: memref<32x10xbf16, #tpu.memory_space<vmem>>, %arg7: memref<1x10xf32, #tpu.memory_space<vmem>>, %arg8: memref<2x10xf32, #tpu.memory_space<vmem>>, %arg9: memref<64x32xf32, #tpu.memory_space<vmem>>, %arg10: memref<64x128xf32, #tpu.memory_space<vmem>>) attributes {dimension_semantics = [#tpu.dimension_semantics<arbitrary>], iteration_bounds = array<i64: 2>, scalar_prefetch = 0 : i64, scratch_operands = 2 : i64, tpu.core_type = #tpu.core_type<tc>, window_params = [{pipeline_mode = #tpu.pipeline_mode<synchronous>, transform_indices = @transform_0, window_bounds = array<i64: 64, 16>}, {pipeline_mode = #tpu.pipeline_mode<synchronous>, transform_indices = @transform_1, window_bounds = array<i64: 16, 128>}, {transform_indices = @transform_2, window_bounds = array<i64: 1, 32, 128>}, {transform_indices = @transform_3, window_bounds = array<i64: 1, 32, 128>}, {transform_indices = @transform_4, window_bounds = array<i64: 1, 1, 128>}, {pipeline_mode = #tpu.pipeline_mode<synchronous>, transform_indices = @transform_5, window_bounds = array<i64: 32, 10>}, {pipeline_mode = #tpu.pipeline_mode<synchronous>, transform_indices = @transform_6, window_bounds = array<i64: 1, 10>}, {pipeline_mode = #tpu.pipeline_mode<synchronous>, transform_indices = @transform_7, window_bounds = array<i64: 2, 10>}]} {
    %c0 = arith.constant 0 : index
    %c0_0 = arith.constant 0 : index
    %c0_1 = arith.constant 0 : index
    %0 = vector.load %arg5[%c0, %c0_0, %c0_1] : memref<1x1x128xf32, #tpu.memory_space<vmem>>, vector<1x1x128xf32>
    %1 = vector.shape_cast %0 : vector<1x1x128xf32> to vector<1x128xf32>
    %c0_i32 = arith.constant 0 : i32
    %2 = arith.cmpi eq, %arg0, %c0_i32 : i32
    %3 = arith.extui %2 : i1 to i32
    %c0_i32_2 = arith.constant 0 : i32
    %4 = arith.cmpi ne, %3, %c0_i32_2 : i32
    scf.if %4 {
      %c0_52 = arith.constant 0 : index
      %c0_53 = arith.constant 0 : index
      %215 = vector.load %arg1[%c0_52, %c0_53] : memref<64x16xbf16, #tpu.memory_space<vmem>>, vector<64x16xbf16>
      %c0_54 = arith.constant 0 : index
      %c0_55 = arith.constant 0 : index
      %216 = vector.load %arg2[%c0_54, %c0_55] : memref<16x128xbf16, #tpu.memory_space<vmem>>, vector<16x128xbf16>
      %cst_56 = arith.constant dense<0.000000e+00> : vector<64x128xf32>
      %217 = tpu.matmul %215, %216, %cst_56 {dimension_numbers = #tpu.dot_dimension_numbers<[1], [0], [0], [1], [0, 0, 1, 1], [], []>} : vector<64x16xbf16>, vector<16x128xbf16>, vector<64x128xf32> -> vector<64x128xf32>
      %218 = vector.broadcast %1 : vector<1x128xf32> to vector<64x128xf32>
      %219 = arith.addf %217, %218 : vector<64x128xf32>
      %c0_57 = arith.constant 0 : index
      %c0_58 = arith.constant 0 : index
      %220 = vector.load %arg10[%c0_57, %c0_58] : memref<64x128xf32, #tpu.memory_space<vmem>>, vector<64x128xf32>
      tpu.vector_store %arg10[%c0_57, %c0_58], %219 {strides = array<i32>} : memref<64x128xf32, #tpu.memory_space<vmem>>, vector<64x128xf32>,
    } else {
    }
    %c0_i32_3 = arith.constant 0 : i32
    %5 = arith.cmpi sgt, %arg0, %c0_i32_3 : i32
    %6 = arith.extui %5 : i1 to i32
    %c0_i32_4 = arith.constant 0 : i32
    %7 = arith.cmpi ne, %6, %c0_i32_4 : i32
    scf.if %7 {
      %c0_52 = arith.constant 0 : index
      %c0_53 = arith.constant 0 : index
      %215 = vector.load %arg9[%c0_52, %c0_53] : memref<64x32xf32, #tpu.memory_space<vmem>>, vector<64x32xf32>
      %216 = arith.truncf %215 : vector<64x32xf32> to vector<64x32xbf16>
      %c0_54 = arith.constant 0 : index
      %c0_55 = arith.constant 0 : index
      %c0_56 = arith.constant 0 : index
      %217 = vector.load %arg3[%c0_54, %c0_55, %c0_56] : memref<1x32x128xbf16, #tpu.memory_space<vmem>>, vector<1x32x128xbf16>
      %218 = vector.shape_cast %217 : vector<1x32x128xbf16> to vector<32x128xbf16>
      %cst_57 = arith.constant dense<0.000000e+00> : vector<64x128xf32>
      %219 = tpu.matmul %216, %218, %cst_57 {dimension_numbers = #tpu.dot_dimension_numbers<[1], [0], [0], [1], [0, 0, 1, 1], [], []>} : vector<64x32xbf16>, vector<32x128xbf16>, vector<64x128xf32> -> vector<64x128xf32>
      %220 = vector.broadcast %1 : vector<1x128xf32> to vector<64x128xf32>
      %221 = arith.addf %219, %220 : vector<64x128xf32>
      %c0_58 = arith.constant 0 : index
      %c0_59 = arith.constant 0 : index
      %222 = vector.load %arg10[%c0_58, %c0_59] : memref<64x128xf32, #tpu.memory_space<vmem>>, vector<64x128xf32>
      tpu.vector_store %arg10[%c0_58, %c0_59], %221 {strides = array<i32>} : memref<64x128xf32, #tpu.memory_space<vmem>>, vector<64x128xf32>,
    } else {
    }
    %c0_5 = arith.constant 0 : index
    %c0_6 = arith.constant 0 : index
    %c0_7 = arith.constant 0 : index
    %8 = vector.load %arg4[%c0_5, %c0_6, %c0_7] : memref<1x32x128xbf16, #tpu.memory_space<vmem>>, vector<1x32x128xbf16>
    %9 = vector.shape_cast %8 : vector<1x32x128xbf16> to vector<32x128xbf16>
    %c1_i32 = arith.constant 1 : i32
    %10 = arith.cmpi slt, %arg0, %c1_i32 : i32
    %cst = arith.constant 0.000000e+00 : f32
    %11 = vector.broadcast %cst : f32 to vector<8x32xf32>
    %c0_i32_8 = arith.constant 0 : i32
    %c8_i32 = arith.constant 8 : i32
    %12 = arith.muli %c0_i32_8, %c8_i32 : i32
    %13 = tpu.assume_multiple %12, 8 : i32
    %14 = arith.index_cast %13 : i32 to index
    %c0_9 = arith.constant 0 : index
    %15 = vector.load %arg10[%14, %c0_9] : memref<64x128xf32, #tpu.memory_space<vmem>>, vector<8x128xf32>
    %16 = arith.truncf %11 : vector<8x32xf32> to vector<8x32xbf16>
    %cst_10 = arith.constant dense<0.000000e+00> : vector<8x128xf32>
    %17 = tpu.matmul %16, %9, %cst_10 {dimension_numbers = #tpu.dot_dimension_numbers<[1], [0], [0], [1], [0, 0, 1, 1], [], []>} : vector<8x32xbf16>, vector<32x128xbf16>, vector<8x128xf32> -> vector<8x128xf32>
    %18 = arith.addf %15, %17 : vector<8x128xf32>
    %19 = vector.extract_strided_slice %18 {offsets = [0, 0], sizes = [8, 96], strides = [1, 1]} : vector<8x128xf32> to vector<8x96xf32>
    %20 = arith.negf %19 : vector<8x96xf32>
    %21 = math.exp %20 : vector<8x96xf32>
    %cst_11 = arith.constant 1.000000e+00 : f32
    %22 = vector.broadcast %cst_11 : f32 to vector<8x96xf32>
    %23 = arith.addf %22, %21 : vector<8x96xf32>
    %24 = arith.divf %22, %23 : vector<8x96xf32>
    %25 = vector.extract_strided_slice %18 {offsets = [0, 96], sizes = [8, 32], strides = [1, 1]} : vector<8x128xf32> to vector<8x32xf32>
    %26 = math.tanh %25 : vector<8x32xf32>
    %27 = vector.extract_strided_slice %24 {offsets = [0, 0], sizes = [8, 32], strides = [1, 1]} : vector<8x96xf32> to vector<8x32xf32>
    %28 = vector.extract_strided_slice %24 {offsets = [0, 32], sizes = [8, 32], strides = [1, 1]} : vector<8x96xf32> to vector<8x32xf32>
    %29 = vector.extract_strided_slice %24 {offsets = [0, 64], sizes = [8, 32], strides = [1, 1]} : vector<8x96xf32> to vector<8x32xf32>
    %30 = arith.mulf %28, %11 : vector<8x32xf32>
    %31 = arith.mulf %27, %26 : vector<8x32xf32>
    %32 = arith.addf %30, %31 : vector<8x32xf32>
    %33 = math.tanh %32 : vector<8x32xf32>
    %34 = arith.mulf %29, %33 : vector<8x32xf32>
    %35 = arith.extui %10 : i1 to i32
    %c0_i32_12 = arith.constant 0 : i32
    %36 = arith.cmpi ne, %35, %c0_i32_12 : i32
    scf.if %36 {
      %215 = arith.index_cast %13 : i32 to index
      %c0_52 = arith.constant 0 : index
      %216 = vector.load %arg9[%215, %c0_52] : memref<64x32xf32, #tpu.memory_space<vmem>>, vector<8x32xf32>
      tpu.vector_store %arg9[%215, %c0_52], %34 {strides = array<i32>} : memref<64x32xf32, #tpu.memory_space<vmem>>, vector<8x32xf32>,
    } else {
    }
    %c1_i32_13 = arith.constant 1 : i32
    %c8_i32_14 = arith.constant 8 : i32
    %37 = arith.muli %c1_i32_13, %c8_i32_14 : i32
    %38 = tpu.assume_multiple %37, 8 : i32
    %39 = arith.index_cast %38 : i32 to index
    %c0_15 = arith.constant 0 : index
    %40 = vector.load %arg10[%39, %c0_15] : memref<64x128xf32, #tpu.memory_space<vmem>>, vector<8x128xf32>
    %41 = arith.truncf %34 : vector<8x32xf32> to vector<8x32xbf16>
    %cst_16 = arith.constant dense<0.000000e+00> : vector<8x128xf32>
    %42 = tpu.matmul %41, %9, %cst_16 {dimension_numbers = #tpu.dot_dimension_numbers<[1], [0], [0], [1], [0, 0, 1, 1], [], []>} : vector<8x32xbf16>, vector<32x128xbf16>, vector<8x128xf32> -> vector<8x128xf32>
    %43 = arith.addf %40, %42 : vector<8x128xf32>
    %44 = vector.extract_strided_slice %43 {offsets = [0, 0], sizes = [8, 96], strides = [1, 1]} : vector<8x128xf32> to vector<8x96xf32>
    %45 = arith.negf %44 : vector<8x96xf32>
    %46 = math.exp %45 : vector<8x96xf32>
    %cst_17 = arith.constant 1.000000e+00 : f32
    %47 = vector.broadcast %cst_17 : f32 to vector<8x96xf32>
    %48 = arith.addf %47, %46 : vector<8x96xf32>
    %49 = arith.divf %47, %48 : vector<8x96xf32>
    %50 = vector.extract_strided_slice %43 {offsets = [0, 96], sizes = [8, 32], strides = [1, 1]} : vector<8x128xf32> to vector<8x32xf32>
    %51 = math.tanh %50 : vector<8x32xf32>
    %52 = vector.extract_strided_slice %49 {offsets = [0, 0], sizes = [8, 32], strides = [1, 1]} : vector<8x96xf32> to vector<8x32xf32>
    %53 = vector.extract_strided_slice %49 {offsets = [0, 32], sizes = [8, 32], strides = [1, 1]} : vector<8x96xf32> to vector<8x32xf32>
    %54 = vector.extract_strided_slice %49 {offsets = [0, 64], sizes = [8, 32], strides = [1, 1]} : vector<8x96xf32> to vector<8x32xf32>
    %55 = arith.mulf %53, %32 : vector<8x32xf32>
    %56 = arith.mulf %52, %51 : vector<8x32xf32>
    %57 = arith.addf %55, %56 : vector<8x32xf32>
    %58 = math.tanh %57 : vector<8x32xf32>
    %59 = arith.mulf %54, %58 : vector<8x32xf32>
    %60 = arith.extui %10 : i1 to i32
    %c0_i32_18 = arith.constant 0 : i32
    %61 = arith.cmpi ne, %60, %c0_i32_18 : i32
    scf.if %61 {
      %215 = arith.index_cast %38 : i32 to index
      %c0_52 = arith.constant 0 : index
      %216 = vector.load %arg9[%215, %c0_52] : memref<64x32xf32, #tpu.memory_space<vmem>>, vector<8x32xf32>
      tpu.vector_store %arg9[%215, %c0_52], %59 {strides = array<i32>} : memref<64x32xf32, #tpu.memory_space<vmem>>, vector<8x32xf32>,
    } else {
    }
    %c2_i32 = arith.constant 2 : i32
    %c8_i32_19 = arith.constant 8 : i32
    %62 = arith.muli %c2_i32, %c8_i32_19 : i32
    %63 = tpu.assume_multiple %62, 8 : i32
    %64 = arith.index_cast %63 : i32 to index
    %c0_20 = arith.constant 0 : index
    %65 = vector.load %arg10[%64, %c0_20] : memref<64x128xf32, #tpu.memory_space<vmem>>, vector<8x128xf32>
    %66 = arith.truncf %59 : vector<8x32xf32> to vector<8x32xbf16>
    %cst_21 = arith.constant dense<0.000000e+00> : vector<8x128xf32>
    %67 = tpu.matmul %66, %9, %cst_21 {dimension_numbers = #tpu.dot_dimension_numbers<[1], [0], [0], [1], [0, 0, 1, 1], [], []>} : vector<8x32xbf16>, vector<32x128xbf16>, vector<8x128xf32> -> vector<8x128xf32>
    %68 = arith.addf %65, %67 : vector<8x128xf32>
    %69 = vector.extract_strided_slice %68 {offsets = [0, 0], sizes = [8, 96], strides = [1, 1]} : vector<8x128xf32> to vector<8x96xf32>
    %70 = arith.negf %69 : vector<8x96xf32>
    %71 = math.exp %70 : vector<8x96xf32>
    %cst_22 = arith.constant 1.000000e+00 : f32
    %72 = vector.broadcast %cst_22 : f32 to vector<8x96xf32>
    %73 = arith.addf %72, %71 : vector<8x96xf32>
    %74 = arith.divf %72, %73 : vector<8x96xf32>
    %75 = vector.extract_strided_slice %68 {offsets = [0, 96], sizes = [8, 32], strides = [1, 1]} : vector<8x128xf32> to vector<8x32xf32>
    %76 = math.tanh %75 : vector<8x32xf32>
    %77 = vector.extract_strided_slice %74 {offsets = [0, 0], sizes = [8, 32], strides = [1, 1]} : vector<8x96xf32> to vector<8x32xf32>
    %78 = vector.extract_strided_slice %74 {offsets = [0, 32], sizes = [8, 32], strides = [1, 1]} : vector<8x96xf32> to vector<8x32xf32>
    %79 = vector.extract_strided_slice %74 {offsets = [0, 64], sizes = [8, 32], strides = [1, 1]} : vector<8x96xf32> to vector<8x32xf32>
    %80 = arith.mulf %78, %57 : vector<8x32xf32>
    %81 = arith.mulf %77, %76 : vector<8x32xf32>
    %82 = arith.addf %80, %81 : vector<8x32xf32>
    %83 = math.tanh %82 : vector<8x32xf32>
    %84 = arith.mulf %79, %83 : vector<8x32xf32>
    %85 = arith.extui %10 : i1 to i32
    %c0_i32_23 = arith.constant 0 : i32
    %86 = arith.cmpi ne, %85, %c0_i32_23 : i32
    scf.if %86 {
      %215 = arith.index_cast %63 : i32 to index
      %c0_52 = arith.constant 0 : index
      %216 = vector.load %arg9[%215, %c0_52] : memref<64x32xf32, #tpu.memory_space<vmem>>, vector<8x32xf32>
      tpu.vector_store %arg9[%215, %c0_52], %84 {strides = array<i32>} : memref<64x32xf32, #tpu.memory_space<vmem>>, vector<8x32xf32>,
    } else {
    }
    %c3_i32 = arith.constant 3 : i32
    %c8_i32_24 = arith.constant 8 : i32
    %87 = arith.muli %c3_i32, %c8_i32_24 : i32
    %88 = tpu.assume_multiple %87, 8 : i32
    %89 = arith.index_cast %88 : i32 to index
    %c0_25 = arith.constant 0 : index
    %90 = vector.load %arg10[%89, %c0_25] : memref<64x128xf32, #tpu.memory_space<vmem>>, vector<8x128xf32>
    %91 = arith.truncf %84 : vector<8x32xf32> to vector<8x32xbf16>
    %cst_26 = arith.constant dense<0.000000e+00> : vector<8x128xf32>
    %92 = tpu.matmul %91, %9, %cst_26 {dimension_numbers = #tpu.dot_dimension_numbers<[1], [0], [0], [1], [0, 0, 1, 1], [], []>} : vector<8x32xbf16>, vector<32x128xbf16>, vector<8x128xf32> -> vector<8x128xf32>
    %93 = arith.addf %90, %92 : vector<8x128xf32>
    %94 = vector.extract_strided_slice %93 {offsets = [0, 0], sizes = [8, 96], strides = [1, 1]} : vector<8x128xf32> to vector<8x96xf32>
    %95 = arith.negf %94 : vector<8x96xf32>
    %96 = math.exp %95 : vector<8x96xf32>
    %cst_27 = arith.constant 1.000000e+00 : f32
    %97 = vector.broadcast %cst_27 : f32 to vector<8x96xf32>
    %98 = arith.addf %97, %96 : vector<8x96xf32>
    %99 = arith.divf %97, %98 : vector<8x96xf32>
    %100 = vector.extract_strided_slice %93 {offsets = [0, 96], sizes = [8, 32], strides = [1, 1]} : vector<8x128xf32> to vector<8x32xf32>
    %101 = math.tanh %100 : vector<8x32xf32>
    %102 = vector.extract_strided_slice %99 {offsets = [0, 0], sizes = [8, 32], strides = [1, 1]} : vector<8x96xf32> to vector<8x32xf32>
    %103 = vector.extract_strided_slice %99 {offsets = [0, 32], sizes = [8, 32], strides = [1, 1]} : vector<8x96xf32> to vector<8x32xf32>
    %104 = vector.extract_strided_slice %99 {offsets = [0, 64], sizes = [8, 32], strides = [1, 1]} : vector<8x96xf32> to vector<8x32xf32>
    %105 = arith.mulf %103, %82 : vector<8x32xf32>
    %106 = arith.mulf %102, %101 : vector<8x32xf32>
    %107 = arith.addf %105, %106 : vector<8x32xf32>
    %108 = math.tanh %107 : vector<8x32xf32>
    %109 = arith.mulf %104, %108 : vector<8x32xf32>
    %110 = arith.extui %10 : i1 to i32
    %c0_i32_28 = arith.constant 0 : i32
    %111 = arith.cmpi ne, %110, %c0_i32_28 : i32
    scf.if %111 {
      %215 = arith.index_cast %88 : i32 to index
      %c0_52 = arith.constant 0 : index
      %216 = vector.load %arg9[%215, %c0_52] : memref<64x32xf32, #tpu.memory_space<vmem>>, vector<8x32xf32>
      tpu.vector_store %arg9[%215, %c0_52], %109 {strides = array<i32>} : memref<64x32xf32, #tpu.memory_space<vmem>>, vector<8x32xf32>,
    } else {
    }
    %c4_i32 = arith.constant 4 : i32
    %c8_i32_29 = arith.constant 8 : i32
    %112 = arith.muli %c4_i32, %c8_i32_29 : i32
    %113 = tpu.assume_multiple %112, 8 : i32
    %114 = arith.index_cast %113 : i32 to index
    %c0_30 = arith.constant 0 : index
    %115 = vector.load %arg10[%114, %c0_30] : memref<64x128xf32, #tpu.memory_space<vmem>>, vector<8x128xf32>
    %116 = arith.truncf %109 : vector<8x32xf32> to vector<8x32xbf16>
    %cst_31 = arith.constant dense<0.000000e+00> : vector<8x128xf32>
    %117 = tpu.matmul %116, %9, %cst_31 {dimension_numbers = #tpu.dot_dimension_numbers<[1], [0], [0], [1], [0, 0, 1, 1], [], []>} : vector<8x32xbf16>, vector<32x128xbf16>, vector<8x128xf32> -> vector<8x128xf32>
    %118 = arith.addf %115, %117 : vector<8x128xf32>
    %119 = vector.extract_strided_slice %118 {offsets = [0, 0], sizes = [8, 96], strides = [1, 1]} : vector<8x128xf32> to vector<8x96xf32>
    %120 = arith.negf %119 : vector<8x96xf32>
    %121 = math.exp %120 : vector<8x96xf32>
    %cst_32 = arith.constant 1.000000e+00 : f32
    %122 = vector.broadcast %cst_32 : f32 to vector<8x96xf32>
    %123 = arith.addf %122, %121 : vector<8x96xf32>
    %124 = arith.divf %122, %123 : vector<8x96xf32>
    %125 = vector.extract_strided_slice %118 {offsets = [0, 96], sizes = [8, 32], strides = [1, 1]} : vector<8x128xf32> to vector<8x32xf32>
    %126 = math.tanh %125 : vector<8x32xf32>
    %127 = vector.extract_strided_slice %124 {offsets = [0, 0], sizes = [8, 32], strides = [1, 1]} : vector<8x96xf32> to vector<8x32xf32>
    %128 = vector.extract_strided_slice %124 {offsets = [0, 32], sizes = [8, 32], strides = [1, 1]} : vector<8x96xf32> to vector<8x32xf32>
    %129 = vector.extract_strided_slice %124 {offsets = [0, 64], sizes = [8, 32], strides = [1, 1]} : vector<8x96xf32> to vector<8x32xf32>
    %130 = arith.mulf %128, %107 : vector<8x32xf32>
    %131 = arith.mulf %127, %126 : vector<8x32xf32>
    %132 = arith.addf %130, %131 : vector<8x32xf32>
    %133 = math.tanh %132 : vector<8x32xf32>
    %134 = arith.mulf %129, %133 : vector<8x32xf32>
    %135 = arith.extui %10 : i1 to i32
    %c0_i32_33 = arith.constant 0 : i32
    %136 = arith.cmpi ne, %135, %c0_i32_33 : i32
    scf.if %136 {
      %215 = arith.index_cast %113 : i32 to index
      %c0_52 = arith.constant 0 : index
      %216 = vector.load %arg9[%215, %c0_52] : memref<64x32xf32, #tpu.memory_space<vmem>>, vector<8x32xf32>
      tpu.vector_store %arg9[%215, %c0_52], %134 {strides = array<i32>} : memref<64x32xf32, #tpu.memory_space<vmem>>, vector<8x32xf32>,
    } else {
    }
    %c5_i32 = arith.constant 5 : i32
    %c8_i32_34 = arith.constant 8 : i32
    %137 = arith.muli %c5_i32, %c8_i32_34 : i32
    %138 = tpu.assume_multiple %137, 8 : i32
    %139 = arith.index_cast %138 : i32 to index
    %c0_35 = arith.constant 0 : index
    %140 = vector.load %arg10[%139, %c0_35] : memref<64x128xf32, #tpu.memory_space<vmem>>, vector<8x128xf32>
    %141 = arith.truncf %134 : vector<8x32xf32> to vector<8x32xbf16>
    %cst_36 = arith.constant dense<0.000000e+00> : vector<8x128xf32>
    %142 = tpu.matmul %141, %9, %cst_36 {dimension_numbers = #tpu.dot_dimension_numbers<[1], [0], [0], [1], [0, 0, 1, 1], [], []>} : vector<8x32xbf16>, vector<32x128xbf16>, vector<8x128xf32> -> vector<8x128xf32>
    %143 = arith.addf %140, %142 : vector<8x128xf32>
    %144 = vector.extract_strided_slice %143 {offsets = [0, 0], sizes = [8, 96], strides = [1, 1]} : vector<8x128xf32> to vector<8x96xf32>
    %145 = arith.negf %144 : vector<8x96xf32>
    %146 = math.exp %145 : vector<8x96xf32>
    %cst_37 = arith.constant 1.000000e+00 : f32
    %147 = vector.broadcast %cst_37 : f32 to vector<8x96xf32>
    %148 = arith.addf %147, %146 : vector<8x96xf32>
    %149 = arith.divf %147, %148 : vector<8x96xf32>
    %150 = vector.extract_strided_slice %143 {offsets = [0, 96], sizes = [8, 32], strides = [1, 1]} : vector<8x128xf32> to vector<8x32xf32>
    %151 = math.tanh %150 : vector<8x32xf32>
    %152 = vector.extract_strided_slice %149 {offsets = [0, 0], sizes = [8, 32], strides = [1, 1]} : vector<8x96xf32> to vector<8x32xf32>
    %153 = vector.extract_strided_slice %149 {offsets = [0, 32], sizes = [8, 32], strides = [1, 1]} : vector<8x96xf32> to vector<8x32xf32>
    %154 = vector.extract_strided_slice %149 {offsets = [0, 64], sizes = [8, 32], strides = [1, 1]} : vector<8x96xf32> to vector<8x32xf32>
    %155 = arith.mulf %153, %132 : vector<8x32xf32>
    %156 = arith.mulf %152, %151 : vector<8x32xf32>
    %157 = arith.addf %155, %156 : vector<8x32xf32>
    %158 = math.tanh %157 : vector<8x32xf32>
    %159 = arith.mulf %154, %158 : vector<8x32xf32>
    %160 = arith.extui %10 : i1 to i32
    %c0_i32_38 = arith.constant 0 : i32
    %161 = arith.cmpi ne, %160, %c0_i32_38 : i32
    scf.if %161 {
      %215 = arith.index_cast %138 : i32 to index
      %c0_52 = arith.constant 0 : index
      %216 = vector.load %arg9[%215, %c0_52] : memref<64x32xf32, #tpu.memory_space<vmem>>, vector<8x32xf32>
      tpu.vector_store %arg9[%215, %c0_52], %159 {strides = array<i32>} : memref<64x32xf32, #tpu.memory_space<vmem>>, vector<8x32xf32>,
    } else {
    }
    %c6_i32 = arith.constant 6 : i32
    %c8_i32_39 = arith.constant 8 : i32
    %162 = arith.muli %c6_i32, %c8_i32_39 : i32
    %163 = tpu.assume_multiple %162, 8 : i32
    %164 = arith.index_cast %163 : i32 to index
    %c0_40 = arith.constant 0 : index
    %165 = vector.load %arg10[%164, %c0_40] : memref<64x128xf32, #tpu.memory_space<vmem>>, vector<8x128xf32>
    %166 = arith.truncf %159 : vector<8x32xf32> to vector<8x32xbf16>
    %cst_41 = arith.constant dense<0.000000e+00> : vector<8x128xf32>
    %167 = tpu.matmul %166, %9, %cst_41 {dimension_numbers = #tpu.dot_dimension_numbers<[1], [0], [0], [1], [0, 0, 1, 1], [], []>} : vector<8x32xbf16>, vector<32x128xbf16>, vector<8x128xf32> -> vector<8x128xf32>
    %168 = arith.addf %165, %167 : vector<8x128xf32>
    %169 = vector.extract_strided_slice %168 {offsets = [0, 0], sizes = [8, 96], strides = [1, 1]} : vector<8x128xf32> to vector<8x96xf32>
    %170 = arith.negf %169 : vector<8x96xf32>
    %171 = math.exp %170 : vector<8x96xf32>
    %cst_42 = arith.constant 1.000000e+00 : f32
    %172 = vector.broadcast %cst_42 : f32 to vector<8x96xf32>
    %173 = arith.addf %172, %171 : vector<8x96xf32>
    %174 = arith.divf %172, %173 : vector<8x96xf32>
    %175 = vector.extract_strided_slice %168 {offsets = [0, 96], sizes = [8, 32], strides = [1, 1]} : vector<8x128xf32> to vector<8x32xf32>
    %176 = math.tanh %175 : vector<8x32xf32>
    %177 = vector.extract_strided_slice %174 {offsets = [0, 0], sizes = [8, 32], strides = [1, 1]} : vector<8x96xf32> to vector<8x32xf32>
    %178 = vector.extract_strided_slice %174 {offsets = [0, 32], sizes = [8, 32], strides = [1, 1]} : vector<8x96xf32> to vector<8x32xf32>
    %179 = vector.extract_strided_slice %174 {offsets = [0, 64], sizes = [8, 32], strides = [1, 1]} : vector<8x96xf32> to vector<8x32xf32>
    %180 = arith.mulf %178, %157 : vector<8x32xf32>
    %181 = arith.mulf %177, %176 : vector<8x32xf32>
    %182 = arith.addf %180, %181 : vector<8x32xf32>
    %183 = math.tanh %182 : vector<8x32xf32>
    %184 = arith.mulf %179, %183 : vector<8x32xf32>
    %185 = arith.extui %10 : i1 to i32
    %c0_i32_43 = arith.constant 0 : i32
    %186 = arith.cmpi ne, %185, %c0_i32_43 : i32
    scf.if %186 {
      %215 = arith.index_cast %163 : i32 to index
      %c0_52 = arith.constant 0 : index
      %216 = vector.load %arg9[%215, %c0_52] : memref<64x32xf32, #tpu.memory_space<vmem>>, vector<8x32xf32>
      tpu.vector_store %arg9[%215, %c0_52], %184 {strides = array<i32>} : memref<64x32xf32, #tpu.memory_space<vmem>>, vector<8x32xf32>,
    } else {
    }
    %c7_i32 = arith.constant 7 : i32
    %c8_i32_44 = arith.constant 8 : i32
    %187 = arith.muli %c7_i32, %c8_i32_44 : i32
    %188 = tpu.assume_multiple %187, 8 : i32
    %189 = arith.index_cast %188 : i32 to index
    %c0_45 = arith.constant 0 : index
    %190 = vector.load %arg10[%189, %c0_45] : memref<64x128xf32, #tpu.memory_space<vmem>>, vector<8x128xf32>
    %191 = arith.truncf %184 : vector<8x32xf32> to vector<8x32xbf16>
    %cst_46 = arith.constant dense<0.000000e+00> : vector<8x128xf32>
    %192 = tpu.matmul %191, %9, %cst_46 {dimension_numbers = #tpu.dot_dimension_numbers<[1], [0], [0], [1], [0, 0, 1, 1], [], []>} : vector<8x32xbf16>, vector<32x128xbf16>, vector<8x128xf32> -> vector<8x128xf32>
    %193 = arith.addf %190, %192 : vector<8x128xf32>
    %194 = vector.extract_strided_slice %193 {offsets = [0, 0], sizes = [8, 96], strides = [1, 1]} : vector<8x128xf32> to vector<8x96xf32>
    %195 = arith.negf %194 : vector<8x96xf32>
    %196 = math.exp %195 : vector<8x96xf32>
    %cst_47 = arith.constant 1.000000e+00 : f32
    %197 = vector.broadcast %cst_47 : f32 to vector<8x96xf32>
    %198 = arith.addf %197, %196 : vector<8x96xf32>
    %199 = arith.divf %197, %198 : vector<8x96xf32>
    %200 = vector.extract_strided_slice %193 {offsets = [0, 96], sizes = [8, 32], strides = [1, 1]} : vector<8x128xf32> to vector<8x32xf32>
    %201 = math.tanh %200 : vector<8x32xf32>
    %202 = vector.extract_strided_slice %199 {offsets = [0, 0], sizes = [8, 32], strides = [1, 1]} : vector<8x96xf32> to vector<8x32xf32>
    %203 = vector.extract_strided_slice %199 {offsets = [0, 32], sizes = [8, 32], strides = [1, 1]} : vector<8x96xf32> to vector<8x32xf32>
    %204 = vector.extract_strided_slice %199 {offsets = [0, 64], sizes = [8, 32], strides = [1, 1]} : vector<8x96xf32> to vector<8x32xf32>
    %205 = arith.mulf %203, %182 : vector<8x32xf32>
    %206 = arith.mulf %202, %201 : vector<8x32xf32>
    %207 = arith.addf %205, %206 : vector<8x32xf32>
    %208 = math.tanh %207 : vector<8x32xf32>
    %209 = arith.mulf %204, %208 : vector<8x32xf32>
    %210 = arith.extui %10 : i1 to i32
    %c0_i32_48 = arith.constant 0 : i32
    %211 = arith.cmpi ne, %210, %c0_i32_48 : i32
    scf.if %211 {
      %215 = arith.index_cast %188 : i32 to index
      %c0_52 = arith.constant 0 : index
      %216 = vector.load %arg9[%215, %c0_52] : memref<64x32xf32, #tpu.memory_space<vmem>>, vector<8x32xf32>
      tpu.vector_store %arg9[%215, %c0_52], %209 {strides = array<i32>} : memref<64x32xf32, #tpu.memory_space<vmem>>, vector<8x32xf32>,
    } else {
    }
    %c8_i32_49 = arith.constant 8 : i32
    %c1_i32_50 = arith.constant 1 : i32
    %212 = arith.cmpi eq, %arg0, %c1_i32_50 : i32
    %213 = arith.extui %212 : i1 to i32
    %c0_i32_51 = arith.constant 0 : i32
    %214 = arith.cmpi ne, %213, %c0_i32_51 : i32
    scf.if %214 {
      %215 = arith.truncf %209 : vector<8x32xf32> to vector<8x32xbf16>
      %c0_52 = arith.constant 0 : index
      %c0_53 = arith.constant 0 : index
      %216 = vector.load %arg6[%c0_52, %c0_53] : memref<32x10xbf16, #tpu.memory_space<vmem>>, vector<32x10xbf16>
      %cst_54 = arith.constant dense<0.000000e+00> : vector<8x10xf32>
      %217 = tpu.matmul %215, %216, %cst_54 {dimension_numbers = #tpu.dot_dimension_numbers<[1], [0], [0], [1], [0, 0, 1, 1], [], []>} : vector<8x32xbf16>, vector<32x10xbf16>, vector<8x10xf32> -> vector<8x10xf32>
      %c0_55 = arith.constant 0 : index
      %c0_56 = arith.constant 0 : index
      %218 = vector.load %arg7[%c0_55, %c0_56] : memref<1x10xf32, #tpu.memory_space<vmem>>, vector<1x10xf32>
      %219 = vector.broadcast %218 : vector<1x10xf32> to vector<8x10xf32>
      %220 = arith.addf %217, %219 : vector<8x10xf32>
      %221 = vector.extract_strided_slice %220 {offsets = [0, 0], sizes = [2, 10], strides = [1, 1]} : vector<8x10xf32> to vector<2x10xf32>
      %c0_57 = arith.constant 0 : index
      %c0_58 = arith.constant 0 : index
      %222 = vector.load %arg8[%c0_57, %c0_58] : memref<2x10xf32, #tpu.memory_space<vmem>>, vector<2x10xf32>
      tpu.vector_store %arg8[%c0_57, %c0_58], %221 {strides = array<i32>} : memref<2x10xf32, #tpu.memory_space<vmem>>, vector<2x10xf32>,
    } else {
    }
    return
  }
  func.func @transform_0(%arg0: i32) -> (i32, i32) {
    %c0_i32 = arith.constant 0 : i32
    %c0_i32_0 = arith.constant 0 : i32
    %c0_i32_1 = arith.constant 0 : i32
    return %c0_i32, %c0_i32_0 : i32, i32
  }
  func.func @transform_1(%arg0: i32) -> (i32, i32) {
    %c0_i32 = arith.constant 0 : i32
    %c0_i32_0 = arith.constant 0 : i32
    %c0_i32_1 = arith.constant 0 : i32
    return %c0_i32, %c0_i32_0 : i32, i32
  }
  func.func @transform_2(%arg0: i32) -> (i32, i32, i32) {
    %c1_i32 = arith.constant 1 : i32
    %0 = arith.subi %arg0, %c1_i32 : i32
    %c0_i32 = arith.constant 0 : i32
    %1 = arith.maxsi %0, %c0_i32 : i32
    %c0_i32_0 = arith.constant 0 : i32
    %c0_i32_1 = arith.constant 0 : i32
    %c0_i32_2 = arith.constant 0 : i32
    return %1, %c0_i32_0, %c0_i32_1 : i32, i32, i32
  }
  func.func @transform_3(%arg0: i32) -> (i32, i32, i32) {
    %c0_i32 = arith.constant 0 : i32
    %c0_i32_0 = arith.constant 0 : i32
    %c0_i32_1 = arith.constant 0 : i32
    return %arg0, %c0_i32, %c0_i32_0 : i32, i32, i32
  }
  func.func @transform_4(%arg0: i32) -> (i32, i32, i32) {
    %c0_i32 = arith.constant 0 : i32
    %c0_i32_0 = arith.constant 0 : i32
    %c0_i32_1 = arith.constant 0 : i32
    return %arg0, %c0_i32, %c0_i32_0 : i32, i32, i32
  }
  func.func @transform_5(%arg0: i32) -> (i32, i32) {
    %c0_i32 = arith.constant 0 : i32
    %c0_i32_0 = arith.constant 0 : i32
    %c0_i32_1 = arith.constant 0 : i32
    return %c0_i32, %c0_i32_0 : i32, i32
  }
  func.func @transform_6(%arg0: i32) -> (i32, i32) {
    %c0_i32 = arith.constant 0 : i32
    %c0_i32_0 = arith.constant 0 : i32
    %c0_i32_1 = arith.constant 0 : i32
    return %c0_i32, %c0_i32_0 : i32, i32
  }
  func.func @transform_7(%arg0: i32) -> (i32, i32) {
    %c0_i32 = arith.constant 0 : i32
    %c0_i32_0 = arith.constant 0 : i32
    %c0_i32_1 = arith.constant 0 : i32
    return %c0_i32, %c0_i32_0 : i32, i32
  }
}

</mosaic_0001>

<llo_original>
// kernel: fflstm_encoder1_forward.1
$region0: #{fflstm_encoder1_forward.1}
  #allocation0 [shape = 'u32[]', space=smem, size = 0x4, offset = 0x4, fixed_abs, tag = 'smem constant byte address 0x4 - core index']
  #allocation1 [shape = 'u32[144,128]{1,0:T(1,128)}', space=vmem, size = 0x12000, scoped, tag = 'internal scratch']
  #allocation2 [shape = 'f32[64,32]{1,0:T(8,128)}', space=vmem, size = 0x8000, scoped, tag = 'scratch operand']
  #allocation3 [shape = 'f32[64,128]{1,0:T(8,128)}', space=vmem, size = 0x8000, scoped, tag = 'scratch operand']
  %s0 = inlined_call_operand.vmem [shape: bf16[64,16], index: 0, kind: input, shape index: {}]
  %s1 = inlined_call_operand.vmem [shape: bf16[16,128], index: 1, kind: input, shape index: {}]
  %s2 = inlined_call_operand.vmem [shape: bf16[1,32,128], index: 2, kind: input, shape index: {}]
  %s3 = inlined_call_operand.vmem [shape: bf16[2,32,128], index: 3, kind: input, shape index: {}]
  %s4 = inlined_call_operand.vmem [shape: f32[2,1,128], index: 4, kind: input, shape index: {}]
  %s5 = inlined_call_operand.vmem [shape: bf16[32,10], index: 5, kind: input, shape index: {}]
  %s6 = inlined_call_operand.vmem [shape: f32[1,10], index: 6, kind: input, shape index: {}]
  %s7 = inlined_call_operand.hbm [shape: f32[2,10], index: 7, kind: output, shape index: {}]
  %s8 = sld [smem:[#allocation0]]
  $region105: #{fflstm_encoder1_forward.1} parent=0
    _
  %s10 = ssub.s32 1, %s8
  %s11 = scalar_select 0, %s10, %s8
  $region1: #{fflstm_encoder1_forward.1} parent=0
    #allocation4 [shape = 'u8[1024]{0}', space=vmem, size = 0x400, scoped, tag = 'output window, operand 0, single buffered']
    #allocation5 [shape = 's32[2]{0}', space=sflag, size = 0x8, scoped, tag = 'scoped memory for fflstm_encoder1_forward.1']
    %12 = vsyncpa [#allocation5], 0
    loop: start=0, step=1, limit=4
    $region2: #{fflstm_encoder1_forward.1} parent=1 // loop_pre_header
      _
    $region3: #{fflstm_encoder1_forward.1} parent=1 // loop_header
      %s14 = sphi 0, %s18
      %p15 = scmp.ge.s32.totalorder %s14, 4
      %s22 = sphi 0, %s22
      %s24 = sphi 0, %s22
      %s25 = sphi 0, %s24
      %s39 = sphi 0, %s25
      %s43 = sphi 0, %s43
      %s45 = sphi 0, %s43
      %s46 = sphi 0, %s45
      %s60 = sphi 0, %s46
      %s72 = sphi 0, %s74
      %s75 = sphi 0, %s72
      %s76 = sphi 0, %s75
      %s92 = sphi 0, %s76
      %s98 = sphi 0, %s100
      %s101 = sphi 0, %s98
      %s102 = sphi 0, %s101
      %s118 = sphi 0, %s102
      %s124 = sphi 0, %s126
      %s127 = sphi 0, %s124
      %s128 = sphi 0, %s127
      %s144 = sphi 0, %s128
      %s148 = sphi 0, %s148
      %s150 = sphi 0, %s148
      %s151 = sphi 0, %s150
      %s165 = sphi 0, %s151
      %s169 = sphi 0, %s169
      %s171 = sphi 0, %s169
      %s172 = sphi 0, %s171
      %s186 = sphi 0, %s172
      %s190 = sphi 0, %s190
      %s192 = sphi 0, %s190
      %s193 = sphi 0, %s192
      %s207 = sphi 0, %s193
    $region4: #{fflstm_encoder1_forward.1} parent=1 // loop_header_branch
      %17 = sbr.rel (%p15) target = $region8
    $region5: #{fflstm_encoder1_forward.1} parent=1 // loop_body
      %s19 = ssub.s32 %s14, 1
      %s20 = ssub.s32 %s14, 2
      %s21 = sadd.s32 %s14, 1
      %s23 = sadd.s32 %s22, 1
      %p26 = scmp.eq.s32.totalorder %s14, 1
      %p27 = scmp.ne.s32.totalorder %s22, %s24
      %p28 = scmp.eq.s32.totalorder %s14, 0
      %p29 = por %p27, %p28
      %p30 = scmp.ne.s32.totalorder %s22, %s24
      %p31 = scmp.eq.s32.totalorder %s19, 1
      %p32 = por %p30, %p31
      %p33 = scmp.ne.s32.totalorder %s24, %s25
      %p34 = scmp.eq.s32.totalorder %s19, 0
      %p35 = por %p33, %p34
      %p36 = scmp.ne.s32.totalorder %s24, %s25
      %p37 = scmp.eq.s32.totalorder %s20, 1
      %p38 = por %p36, %p37
      %p40 = scmp.ne.s32.totalorder %s25, %s39
      %p41 = scmp.eq.s32.totalorder %s20, 0
      %p42 = por %p40, %p41
      %s44 = sadd.s32 %s43, 1
      %p47 = scmp.eq.s32.totalorder %s14, 1
      %p48 = scmp.ne.s32.totalorder %s43, %s45
      %p49 = scmp.eq.s32.totalorder %s14, 0
      %p50 = por %p48, %p49
      %p51 = scmp.ne.s32.totalorder %s43, %s45
      %p52 = scmp.eq.s32.totalorder %s19, 1
      %p53 = por %p51, %p52
      %p54 = scmp.ne.s32.totalorder %s45, %s46
      %p55 = scmp.eq.s32.totalorder %s19, 0
      %p56 = por %p54, %p55
      %p57 = scmp.ne.s32.totalorder %s45, %s46
      %p58 = scmp.eq.s32.totalorder %s20, 1
      %p59 = por %p57, %p58
      %p61 = scmp.ne.s32.totalorder %s46, %s60
      %p62 = scmp.eq.s32.totalorder %s20, 0
      %p63 = por %p61, %p62
      %s64 = ssub.s32 %s14, 1
      %p65 = scmp.gt.s32.totalorder %s64, 0
      %s66 = scalar_select %p65, %s64, 0
      %s67 = ssub.s32 %s21, 1
      %p68 = scmp.gt.s32.totalorder %s67, 0
      %s69 = scalar_select %p68, %s67, 0
      %s70 = ssub.s32 %s66, %s69
      %p71 = scmp.eq.s32.totalorder %s70, 0
      %s73 = sadd.s32 %s72, 1
      %s74 = scalar_select %p71, %s72, %s73
      %p77 = pneg %p71
      %p78 = scmp.eq.s32.totalorder %s14, 1
      %p79 = por %p77, %p78
      %p80 = scmp.ne.s32.totalorder %s72, %s75
      %p81 = scmp.eq.s32.totalorder %s14, 0
      %p82 = por %p80, %p81
      %p83 = scmp.ne.s32.totalorder %s72, %s75
      %p84 = scmp.eq.s32.totalorder %s19, 1
      %p85 = por %p83, %p84
      %p86 = scmp.ne.s32.totalorder %s75, %s76
      %p87 = scmp.eq.s32.totalorder %s19, 0
      %p88 = por %p86, %p87
      %p89 = scmp.ne.s32.totalorder %s75, %s76
      %p90 = scmp.eq.s32.totalorder %s20, 1
      %p91 = por %p89, %p90
      %p93 = scmp.ne.s32.totalorder %s76, %s92
      %p94 = scmp.eq.s32.totalorder %s20, 0
      %p95 = por %p93, %p94
      %s96 = ssub.s32 %s14, %s21
      %p97 = scmp.eq.s32.totalorder %s96, 0
      %s99 = sadd.s32 %s98, 1
      %s100 = scalar_select %p97, %s98, %s99
      %p103 = pneg %p97
      %p104 = scmp.eq.s32.totalorder %s14, 1
      %p105 = por %p103, %p104
      %p106 = scmp.ne.s32.totalorder %s98, %s101
      %p107 = scmp.eq.s32.totalorder %s14, 0
      %p108 = por %p106, %p107
      %p109 = scmp.ne.s32.totalorder %s98, %s101
      %p110 = scmp.eq.s32.totalorder %s19, 1
      %p111 = por %p109, %p110
      %p112 = scmp.ne.s32.totalorder %s101, %s102
      %p113 = scmp.eq.s32.totalorder %s19, 0
      %p114 = por %p112, %p113
      %p115 = scmp.ne.s32.totalorder %s101, %s102
      %p116 = scmp.eq.s32.totalorder %s20, 1
      %p117 = por %p115, %p116
      %p119 = scmp.ne.s32.totalorder %s102, %s118
      %p120 = scmp.eq.s32.totalorder %s20, 0
      %p121 = por %p119, %p120
      %s122 = ssub.s32 %s14, %s21
      %p123 = scmp.eq.s32.totalorder %s122, 0
      %s125 = sadd.s32 %s124, 1
      %s126 = scalar_select %p123, %s124, %s125
      %p129 = pneg %p123
      %p130 = scmp.eq.s32.totalorder %s14, 1
      %p131 = por %p129, %p130
      %p132 = scmp.ne.s32.totalorder %s124, %s127
      %p133 = scmp.eq.s32.totalorder %s14, 0
      %p134 = por %p132, %p133
      %p135 = scmp.ne.s32.totalorder %s124, %s127
      %p136 = scmp.eq.s32.totalorder %s19, 1
      %p137 = por %p135, %p136
      %p138 = scmp.ne.s32.totalorder %s127, %s128
      %p139 = scmp.eq.s32.totalorder %s19, 0
      %p140 = por %p138, %p139
      %p141 = scmp.ne.s32.totalorder %s127, %s128
      %p142 = scmp.eq.s32.totalorder %s20, 1
      %p143 = por %p141, %p142
      %p145 = scmp.ne.s32.totalorder %s128, %s144
      %p146 = scmp.eq.s32.totalorder %s20, 0
      %p147 = por %p145, %p146
      %s149 = sadd.s32 %s148, 1
      %p152 = scmp.eq.s32.totalorder %s14, 1
      %p153 = scmp.ne.s32.totalorder %s148, %s150
      %p154 = scmp.eq.s32.totalorder %s14, 0
      %p155 = por %p153, %p154
      %p156 = scmp.ne.s32.totalorder %s148, %s150
      %p157 = scmp.eq.s32.totalorder %s19, 1
      %p158 = por %p156, %p157
      %p159 = scmp.ne.s32.totalorder %s150, %s151
      %p160 = scmp.eq.s32.totalorder %s19, 0
      %p161 = por %p159, %p160
      %p162 = scmp.ne.s32.totalorder %s150, %s151
      %p163 = scmp.eq.s32.totalorder %s20, 1
      %p164 = por %p162, %p163
      %p166 = scmp.ne.s32.totalorder %s151, %s165
      %p167 = scmp.eq.s32.totalorder %s20, 0
      %p168 = por %p166, %p167
      %s170 = sadd.s32 %s169, 1
      %p173 = scmp.eq.s32.totalorder %s14, 1
      %p174 = scmp.ne.s32.totalorder %s169, %s171
      %p175 = scmp.eq.s32.totalorder %s14, 0
      %p176 = por %p174, %p175
      %p177 = scmp.ne.s32.totalorder %s169, %s171
      %p178 = scmp.eq.s32.totalorder %s19, 1
      %p179 = por %p177, %p178
      %p180 = scmp.ne.s32.totalorder %s171, %s172
      %p181 = scmp.eq.s32.totalorder %s19, 0
      %p182 = por %p180, %p181
      %p183 = scmp.ne.s32.totalorder %s171, %s172
      %p184 = scmp.eq.s32.totalorder %s20, 1
      %p185 = por %p183, %p184
      %p187 = scmp.ne.s32.totalorder %s172, %s186
      %p188 = scmp.eq.s32.totalorder %s20, 0
      %p189 = por %p187, %p188
      %s191 = sadd.s32 %s190, 1
      %p194 = scmp.eq.s32.totalorder %s14, 1
      %p195 = scmp.ne.s32.totalorder %s190, %s192
      %p196 = scmp.eq.s32.totalorder %s14, 0
      %p197 = por %p195, %p196
      %p198 = scmp.ne.s32.totalorder %s190, %s192
      %p199 = scmp.eq.s32.totalorder %s19, 1
      %p200 = por %p198, %p199
      %p201 = scmp.ne.s32.totalorder %s192, %s193
      %p202 = scmp.eq.s32.totalorder %s19, 0
      %p203 = por %p201, %p202
      %p204 = scmp.ne.s32.totalorder %s192, %s193
      %p205 = scmp.eq.s32.totalorder %s20, 1
      %p206 = por %p204, %p205
      %p208 = scmp.ne.s32.totalorder %s193, %s207
      %p209 = scmp.eq.s32.totalorder %s20, 0
      %p210 = por %p208, %p209
      %p211 = scmp.le.s32.totalorder 1, %s14
      %p212 = scmp.lt.s32.totalorder %s14, 3
      %p213 = pnand %p211, %p212
      %p214 = pneg %p213
      // Predicated region
      $region9: #{fflstm_encoder1_forward.1} parent=5 // pred_check
        _
      $region10: #{fflstm_encoder1_forward.1} parent=5 // pred_check_branch
        %216 = sbr.rel (%p213) target = $region12
      $region11: #{fflstm_encoder1_forward.1} parent=5 // pred_region
        %s217 = ssub.s32 %s14, 1
        // Predicated region
        $region13: #{fflstm_encoder1_forward.1} parent=11 // pred_check
          %p218 = pneg %p35
        $region14: #{fflstm_encoder1_forward.1} parent=11 // pred_check_branch
          %220 = sbr.rel (%p218) target = $region16
        $region15: #{fflstm_encoder1_forward.1} parent=11 // pred_region
          _
        $region16: #{fflstm_encoder1_forward.1} parent=11 // pred_fallthru
          _
        // Predicated region
        $region17: #{fflstm_encoder1_forward.1} parent=11 // pred_check
          %p221 = pneg %p56
        $region18: #{fflstm_encoder1_forward.1} parent=11 // pred_check_branch
          %223 = sbr.rel (%p221) target = $region20
        $region19: #{fflstm_encoder1_forward.1} parent=11 // pred_region
          _
        $region20: #{fflstm_encoder1_forward.1} parent=11 // pred_fallthru
          _
        // Predicated region
        $region21: #{fflstm_encoder1_forward.1} parent=11 // pred_check
          %p224 = pneg %p161
        $region22: #{fflstm_encoder1_forward.1} parent=11 // pred_check_branch
          %226 = sbr.rel (%p224) target = $region24
        $region23: #{fflstm_encoder1_forward.1} parent=11 // pred_region
          _
        $region24: #{fflstm_encoder1_forward.1} parent=11 // pred_fallthru
          _
        // Predicated region
        $region25: #{fflstm_encoder1_forward.1} parent=11 // pred_check
          %p227 = pneg %p182
        $region26: #{fflstm_encoder1_forward.1} parent=11 // pred_check_branch
          %229 = sbr.rel (%p227) target = $region28
        $region27: #{fflstm_encoder1_forward.1} parent=11 // pred_region
          _
        $region28: #{fflstm_encoder1_forward.1} parent=11 // pred_fallthru
          _
      $region12: #{fflstm_encoder1_forward.1} parent=5 // pred_fallthru
        _
      %p230 = scmp.lt.s32.totalorder %s14, 2
      // Predicated region
      $region29: #{fflstm_encoder1_forward.1} parent=5 // pred_check
        %p231 = pneg %p230
      $region30: #{fflstm_encoder1_forward.1} parent=5 // pred_check_branch
        %233 = sbr.rel (%p231) target = $region32
      $region31: #{fflstm_encoder1_forward.1} parent=5 // pred_region
        // Predicated region
        $region33: #{fflstm_encoder1_forward.1} parent=31 // pred_check
          %p234 = pneg %p82
        $region34: #{fflstm_encoder1_forward.1} parent=31 // pred_check_branch
          %236 = sbr.rel (%p234) target = $region36
        $region35: #{fflstm_encoder1_forward.1} parent=31 // pred_region
          %s237 = ssub.s32 %s14, 1
          %p238 = scmp.gt.s32.totalorder %s237, 0
          %s239 = scalar_select %p238, %s237, 0
          %p240 = scmp.lt.s32.totalorder %s239, 0
          %s241 = scalar_select %p240, %s239, 0
          %s242 = smul.addr %s241, 4
          %s243 = smul.addr %s242, 4
          %s244 = scalar_lea.vmem %s2, %s243
          %s245 = ssub.s32 %s14, 1
          %p246 = scmp.gt.s32.totalorder %s245, 0
          %s247 = scalar_select %p246, %s245, 0
        $region36: #{fflstm_encoder1_forward.1} parent=31 // pred_fallthru
          _
        // Predicated region
        $region37: #{fflstm_encoder1_forward.1} parent=31 // pred_check
          %p248 = pneg %p108
        $region38: #{fflstm_encoder1_forward.1} parent=31 // pred_check_branch
          %250 = sbr.rel (%p248) target = $region40
        $region39: #{fflstm_encoder1_forward.1} parent=31 // pred_region
          %p251 = scmp.lt.s32.totalorder %s14, 1
          %s252 = scalar_select %p251, %s14, 1
          %s253 = smul.addr %s252, 4
          %s254 = smul.addr %s253, 4
          %s255 = scalar_lea.vmem %s3, %s254
        $region40: #{fflstm_encoder1_forward.1} parent=31 // pred_fallthru
          _
        // Predicated region
        $region41: #{fflstm_encoder1_forward.1} parent=31 // pred_check
          %p256 = pneg %p134
        $region42: #{fflstm_encoder1_forward.1} parent=31 // pred_check_branch
          %258 = sbr.rel (%p256) target = $region44
        $region43: #{fflstm_encoder1_forward.1} parent=31 // pred_region
          %p259 = scmp.lt.s32.totalorder %s14, 1
          %s260 = scalar_select %p259, %s14, 1
          %s261 = scalar_lea.vmem %s4, %s260
        $region44: #{fflstm_encoder1_forward.1} parent=31 // pred_fallthru
          _
      $region32: #{fflstm_encoder1_forward.1} parent=5 // pred_fallthru
        _
      %p262 = scmp.le.s32.totalorder 1, %s14
      %p263 = scmp.lt.s32.totalorder %s14, 3
      %p264 = pnand %p262, %p263
      %p265 = pneg %p264
      // Predicated region
      $region45: #{fflstm_encoder1_forward.1} parent=5 // pred_check
        _
      $region46: #{fflstm_encoder1_forward.1} parent=5 // pred_check_branch
        %267 = sbr.rel (%p264) target = $region48
      $region47: #{fflstm_encoder1_forward.1} parent=5 // pred_region
        %s268 = ssub.s32 %s14, 1
        %p269 = pneg %p35
        %p270 = pneg %p32
        %p271 = pneg %p56
        %p272 = pneg %p53
        %s273 = ssub.s32 %s19, 1
        %p274 = scmp.gt.s32.totalorder %s273, 0
        %s275 = scalar_select %p274, %s273, 0
        %p276 = scmp.lt.s32.totalorder %s275, 0
        %s277 = scalar_select %p276, %s275, 0
        %s278 = smul.addr %s277, 4
        %s279 = smul.addr %s278, 4
        %s280 = scalar_lea.vmem %s2, %s279
        %p281 = pneg %p88
        %p282 = pneg %p85
        %p283 = scmp.lt.s32.totalorder %s19, 1
        %s284 = scalar_select %p283, %s19, 1
        %s285 = smul.addr %s284, 4
        %s286 = smul.addr %s285, 4
        %s287 = scalar_lea.vmem %s3, %s286
        %p288 = pneg %p114
        %p289 = pneg %p111
        %p290 = scmp.lt.s32.totalorder %s19, 1
        %s291 = scalar_select %p290, %s19, 1
        %s292 = scalar_lea.vmem %s4, %s291
        %p293 = pneg %p140
        %p294 = pneg %p137
        %p295 = pneg %p161
        %p296 = pneg %p158
        %p297 = pneg %p182
        %p298 = pneg %p179
        %p299 = pneg %p203
        %p300 = pneg %p200
        %s301 = ssub.s32 %s19, 1
        %p302 = scmp.gt.s32.totalorder %s301, 0
        %s303 = scalar_select %p302, %s301, 0
        %p304 = scmp.lt.s32.totalorder %s303, 0
        %s305 = scalar_select %p304, %s303, 0
        %s306 = smul.addr %s305, 4
        %s307 = smul.addr %s306, 4
        %s308 = scalar_lea.vmem %s2, %s307
        %s309 = ssub.s32 %s19, 1
        %p310 = scmp.gt.s32.totalorder %s309, 0
        %s311 = scalar_select %p310, %s309, 0
        %p312 = scmp.lt.s32.totalorder %s19, 1
        %s313 = scalar_select %p312, %s19, 1
        %s314 = smul.addr %s313, 4
        %s315 = smul.addr %s314, 4
        %s316 = scalar_lea.vmem %s3, %s315
        %p317 = scmp.lt.s32.totalorder %s19, 1
        %s318 = scalar_select %p317, %s19, 1
        %s319 = scalar_lea.vmem %s4, %s318
        %v321 = vld [vmem:[%s319] sm:$0x1]
        %p322 = scmp.eq.s32.totalorder %s19, 0
        // Predicated region
        $region49: #{fflstm_encoder1_forward.1} parent=47 // pred_check
          %p323 = pneg %p322
        $region50: #{fflstm_encoder1_forward.1} parent=47 // pred_check_branch
          %325 = sbr.rel (%p323) target = $region52
        $region51: #{fflstm_encoder1_forward.1} parent=47 // pred_region
          %v326 = vld [vmem:[%s0] sm:$0xf]
          %v327 = vld [vmem:[%s0 + $0x4] sm:$0xf]
          %v328 = vld [vmem:[%s0 + $0x8] sm:$0xf]
          %v329 = vld [vmem:[%s0 + $0xc] sm:$0xf]
          %v330 = vld [vmem:[%s0 + $0x10] sm:$0xf]
          %v331 = vld [vmem:[%s0 + $0x14] sm:$0xf]
          %v332 = vld [vmem:[%s0 + $0x18] sm:$0xf]
          %v333 = vld [vmem:[%s0 + $0x1c] sm:$0xf]
          %v334 = vld [vmem:[%s1] sm:$0xf]
          %v335 = vld [vmem:[%s1 + $0x4] sm:$0xf]
          %v337 = vlaneseq
          %v338 = vshrl.u32 %v337, 7
          %v339 = vsub.s32 0, %v338
          %v340 = vrot.slane %v321, %v339
          %v350 = vunpack.c.l.b16 %v326
          %v351 = vunpack.c.l.b16 %v327
          %v352 = vunpack.c.l.b16 %v328
          %v353 = vunpack.c.l.b16 %v329
          %v354 = vunpack.c.l.b16 %v330
          %v355 = vunpack.c.l.b16 %v331
          %v356 = vunpack.c.l.b16 %v332
          %v357 = vunpack.c.l.b16 %v333
          %v358 = vpack.c.b16 %v351, %v350
          %v359 = vpack.c.b16 %v353, %v352
          %v360 = vpack.c.b16 %v355, %v354
          %v361 = vpack.c.b16 %v357, %v356
          %v364 = vunpack.c.l.b16 %v334
          %v365 = vunpack.c.l.b16 %v335
          %v366 = vpack.c.b16 %v365, %v364
          %vm368 = vcmask 130048
          %v370 = vsel %vm368, %v358, 0
          %v373 = vsel %vm368, %v359, 0
          %v376 = vsel %vm368, %v360, 0
          %v379 = vsel %vm368, %v361, 0
          %381 = vmatprep.subr.bf16.mxu0 0
          %382 = vmatpush1.bf16.msra.mxu0 %v366
          %383 = vmatprep.subr.bf16.mxu0 0
          %384 = vmatpush1.bf16.msra.mxu0 0
          %385 = vmatprep.subr.bf16.mxu0 0
          %386 = vmatpush1.bf16.msra.mxu0 0
          %387 = vmatprep.subr.bf16.mxu0 0
          %388 = vmatpush1.bf16.msra.mxu0 0
          %389 = vmatprep.subr.bf16.mxu0 0
          %390 = vmatpush1.bf16.msra.mxu0 0
          %391 = vmatprep.subr.bf16.mxu0 0
          %392 = vmatpush1.bf16.msra.mxu0 0
          %393 = vmatprep.subr.bf16.mxu0 0
          %394 = vmatpush1.bf16.msra.mxu0 0
          %395 = vmatprep.subr.bf16.mxu0 0
          %396 = vmatpush1.bf16.msra.mxu0 0
          %397 = vmatprep.subr.bf16.mxu0 0
          %398 = vmatpush1.bf16.msra.mxu0 0
          %399 = vmatprep.subr.bf16.mxu0 0
          %400 = vmatpush1.bf16.msra.mxu0 0
          %401 = vmatprep.subr.bf16.mxu0 0
          %402 = vmatpush1.bf16.msra.mxu0 0
          %403 = vmatprep.subr.bf16.mxu0 0
          %404 = vmatpush1.bf16.msra.mxu0 0
          %405 = vmatprep.subr.bf16.mxu0 0
          %406 = vmatpush1.bf16.msra.mxu0 0
          %407 = vmatprep.subr.bf16.mxu0 0
          %408 = vmatpush1.bf16.msra.mxu0 0
          %409 = vmatprep.subr.bf16.mxu0 0
          %410 = vmatpush1.bf16.msra.mxu0 0
          %411 = vmatprep.subr.bf16.mxu0 0
          %412 = vmatpush1.bf16.msra.mxu0 0
          %413 = vmatprep.mubr.bf16.mxu0 0
          %414 = vmatmul.mubr.bf16.gmra.mrb[0].mxu0 %v370
          %v415 = vpop.f32.mrb[0].mxu0
          %v416 = vadd.f32 %v340, %v415
          %v417 = vpop.f32.mrb[0].mxu0
          %v418 = vpop.f32.mrb[0].mxu0
          %v419 = vadd.f32 %v340, %v418
          %v420 = vpop.f32.mrb[0].mxu0
          %421 = vmatprep.mubr.bf16.mxu0 0
          %422 = vmatmul.mubr.bf16.gmra.mrb[0].mxu0 %v373
          %v423 = vpop.f32.mrb[0].mxu0
          %v424 = vadd.f32 %v340, %v423
          %v425 = vpop.f32.mrb[0].mxu0
          %v426 = vpop.f32.mrb[0].mxu0
          %v427 = vadd.f32 %v340, %v426
          %v428 = vpop.f32.mrb[0].mxu0
          %429 = vmatprep.mubr.bf16.mxu0 0
          %430 = vmatmul.mubr.bf16.gmra.mrb[0].mxu0 %v376
          %v431 = vpop.f32.mrb[0].mxu0
          %v432 = vadd.f32 %v340, %v431
          %v433 = vpop.f32.mrb[0].mxu0
          %v434 = vpop.f32.mrb[0].mxu0
          %v435 = vadd.f32 %v340, %v434
          %v436 = vpop.f32.mrb[0].mxu0
          %437 = vmatprep.mubr.bf16.mxu0 0
          %438 = vmatmul.mubr.bf16.gmra.mrb[0].mxu0 %v379
          %v439 = vpop.f32.mrb[0].mxu0
          %v440 = vadd.f32 %v340, %v439
          %v441 = vpop.f32.mrb[0].mxu0
          %v442 = vpop.f32.mrb[0].mxu0
          %v443 = vadd.f32 %v340, %v442
          %v444 = vpop.f32.mrb[0].mxu0
          %445 = vdwg.mxu0
          %446 = vst [vmem:[#allocation3] sm:$0xff] %v416
          %447 = vst [vmem:[#allocation3 + $0x8] sm:$0xff] %v419
          %448 = vst [vmem:[#allocation3 + $0x10] sm:$0xff] %v424
          %449 = vst [vmem:[#allocation3 + $0x18] sm:$0xff] %v427
          %450 = vst [vmem:[#allocation3 + $0x20] sm:$0xff] %v432
          %451 = vst [vmem:[#allocation3 + $0x28] sm:$0xff] %v435
          %452 = vst [vmem:[#allocation3 + $0x30] sm:$0xff] %v440
          %453 = vst [vmem:[#allocation3 + $0x38] sm:$0xff] %v443
        $region52: #{fflstm_encoder1_forward.1} parent=47 // pred_fallthru
          _
        %p454 = scmp.gt.s32.totalorder %s19, 0
        // Predicated region
        $region53: #{fflstm_encoder1_forward.1} parent=47 // pred_check
          %p455 = pneg %p454
        $region54: #{fflstm_encoder1_forward.1} parent=47 // pred_check_branch
          %457 = sbr.rel (%p455) target = $region56
        $region55: #{fflstm_encoder1_forward.1} parent=47 // pred_region
          %v458 = vld [vmem:[#allocation2] sm:$0xff]
          %v459 = vld [vmem:[#allocation2 + $0x8] sm:$0xff]
          %v460 = vld [vmem:[#allocation2 + $0x10] sm:$0xff]
          %v461 = vld [vmem:[#allocation2 + $0x18] sm:$0xff]
          %v462 = vld [vmem:[#allocation2 + $0x20] sm:$0xff]
          %v463 = vld [vmem:[#allocation2 + $0x28] sm:$0xff]
          %v464 = vld [vmem:[#allocation2 + $0x30] sm:$0xff]
          %v465 = vld [vmem:[#allocation2 + $0x38] sm:$0xff]
          %v466 = vpack.c.bf16 %v459, %v458
          %v467 = vpack.c.bf16 %v461, %v460
          %v468 = vpack.c.bf16 %v463, %v462
          %v469 = vpack.c.bf16 %v465, %v464
          %v470 = vld [vmem:[%s308] sm:$0xf]
          %v471 = vld [vmem:[%s308 + $0x4] sm:$0xf]
          %v472 = vld [vmem:[%s308 + $0x8] sm:$0xf]
          %v473 = vld [vmem:[%s308 + $0xc] sm:$0xf]
          %v475 = vlaneseq
          %v476 = vshrl.u32 %v475, 7
          %v477 = vsub.s32 0, %v476
          %v478 = vrot.slane %v321, %v477
          %v484 = vunpack.c.l.b16 %v470
          %v485 = vunpack.c.l.b16 %v471
          %v486 = vunpack.c.l.b16 %v472
          %v487 = vunpack.c.l.b16 %v473
          %v488 = vpack.c.b16 %v485, %v484
          %v489 = vpack.c.b16 %v487, %v486
          %vm492 = vcmask 261120
          %v494 = vsel %vm492, %v466, 0
          %v497 = vsel %vm492, %v467, 0
          %v500 = vsel %vm492, %v468, 0
          %v503 = vsel %vm492, %v469, 0
          %505 = vmatprep.subr.bf16.mxu0 0
          %506 = vmatpush1.bf16.msra.mxu0 %v488
          %507 = vmatprep.subr.bf16.mxu0 0
          %508 = vmatpush1.bf16.msra.mxu0 %v489
          %509 = vmatprep.subr.bf16.mxu0 0
          %510 = vmatpush1.bf16.msra.mxu0 0
          %511 = vmatprep.subr.bf16.mxu0 0
          %512 = vmatpush1.bf16.msra.mxu0 0
          %513 = vmatprep.subr.bf16.mxu0 0
          %514 = vmatpush1.bf16.msra.mxu0 0
          %515 = vmatprep.subr.bf16.mxu0 0
          %516 = vmatpush1.bf16.msra.mxu0 0
          %517 = vmatprep.subr.bf16.mxu0 0
          %518 = vmatpush1.bf16.msra.mxu0 0
          %519 = vmatprep.subr.bf16.mxu0 0
          %520 = vmatpush1.bf16.msra.mxu0 0
          %521 = vmatprep.subr.bf16.mxu0 0
          %522 = vmatpush1.bf16.msra.mxu0 0
          %523 = vmatprep.subr.bf16.mxu0 0
          %524 = vmatpush1.bf16.msra.mxu0 0
          %525 = vmatprep.subr.bf16.mxu0 0
          %526 = vmatpush1.bf16.msra.mxu0 0
          %527 = vmatprep.subr.bf16.mxu0 0
          %528 = vmatpush1.bf16.msra.mxu0 0
          %529 = vmatprep.subr.bf16.mxu0 0
          %530 = vmatpush1.bf16.msra.mxu0 0
          %531 = vmatprep.subr.bf16.mxu0 0
          %532 = vmatpush1.bf16.msra.mxu0 0
          %533 = vmatprep.subr.bf16.mxu0 0
          %534 = vmatpush1.bf16.msra.mxu0 0
          %535 = vmatprep.subr.bf16.mxu0 0
          %536 = vmatpush1.bf16.msra.mxu0 0
          %537 = vmatprep.mubr.bf16.mxu0 0
          %538 = vmatmul.mubr.bf16.gmra.mrb[0].mxu0 %v494
          %v539 = vpop.f32.mrb[0].mxu0
          %v540 = vadd.f32 %v478, %v539
          %v541 = vpop.f32.mrb[0].mxu0
          %v542 = vpop.f32.mrb[0].mxu0
          %v543 = vadd.f32 %v478, %v542
          %v544 = vpop.f32.mrb[0].mxu0
          %545 = vmatprep.mubr.bf16.mxu0 0
          %546 = vmatmul.mubr.bf16.gmra.mrb[0].mxu0 %v497
          %v547 = vpop.f32.mrb[0].mxu0
          %v548 = vadd.f32 %v478, %v547
          %v549 = vpop.f32.mrb[0].mxu0
          %v550 = vpop.f32.mrb[0].mxu0
          %v551 = vadd.f32 %v478, %v550
          %v552 = vpop.f32.mrb[0].mxu0
          %553 = vmatprep.mubr.bf16.mxu0 0
          %554 = vmatmul.mubr.bf16.gmra.mrb[0].mxu0 %v500
          %v555 = vpop.f32.mrb[0].mxu0
          %v556 = vadd.f32 %v478, %v555
          %v557 = vpop.f32.mrb[0].mxu0
          %v558 = vpop.f32.mrb[0].mxu0
          %v559 = vadd.f32 %v478, %v558
          %v560 = vpop.f32.mrb[0].mxu0
          %561 = vmatprep.mubr.bf16.mxu0 0
          %562 = vmatmul.mubr.bf16.gmra.mrb[0].mxu0 %v503
          %v563 = vpop.f32.mrb[0].mxu0
          %v564 = vadd.f32 %v478, %v563
          %v565 = vpop.f32.mrb[0].mxu0
          %v566 = vpop.f32.mrb[0].mxu0
          %v567 = vadd.f32 %v478, %v566
          %v568 = vpop.f32.mrb[0].mxu0
          %569 = vdwg.mxu0
          %570 = vst [vmem:[#allocation3] sm:$0xff] %v540
          %571 = vst [vmem:[#allocation3 + $0x8] sm:$0xff] %v543
          %572 = vst [vmem:[#allocation3 + $0x10] sm:$0xff] %v548
          %573 = vst [vmem:[#allocation3 + $0x18] sm:$0xff] %v551
          %574 = vst [vmem:[#allocation3 + $0x20] sm:$0xff] %v556
          %575 = vst [vmem:[#allocation3 + $0x28] sm:$0xff] %v559
          %576 = vst [vmem:[#allocation3 + $0x30] sm:$0xff] %v564
          %577 = vst [vmem:[#allocation3 + $0x38] sm:$0xff] %v567
        $region56: #{fflstm_encoder1_forward.1} parent=47 // pred_fallthru
          _
        %v578 = vld [vmem:[%s316] sm:$0xf]
        %v579 = vld [vmem:[%s316 + $0x4] sm:$0xf]
        %v580 = vld [vmem:[%s316 + $0x8] sm:$0xf]
        %v581 = vld [vmem:[%s316 + $0xc] sm:$0xf]
        %p582 = scmp.lt.s32.totalorder %s19, 1
        %v583 = vld [vmem:[#allocation3] sm:$0xff]
        %v588 = vunpack.c.l.b16 %v578
        %v589 = vunpack.c.l.b16 %v579
        %v590 = vunpack.c.l.b16 %v580
        %v591 = vunpack.c.l.b16 %v581
        %v592 = vpack.c.b16 %v589, %v588
        %v593 = vpack.c.b16 %v591, %v590
        %vm596 = vcmask 261120
        %v598 = vsel %vm596, 0, 0
        %600 = vmatprep.subr.bf16.mxu0 0
        %601 = vmatpush1.bf16.msra.mxu0 %v592
        %602 = vmatprep.subr.bf16.mxu0 0
        %603 = vmatpush1.bf16.msra.mxu0 %v593
        %604 = vmatprep.subr.bf16.mxu0 0
        %605 = vmatpush1.bf16.msra.mxu0 0
        %606 = vmatprep.subr.bf16.mxu0 0
        %607 = vmatpush1.bf16.msra.mxu0 0
        %608 = vmatprep.subr.bf16.mxu0 0
        %609 = vmatpush1.bf16.msra.mxu0 0
        %610 = vmatprep.subr.bf16.mxu0 0
        %611 = vmatpush1.bf16.msra.mxu0 0
        %612 = vmatprep.subr.bf16.mxu0 0
        %613 = vmatpush1.bf16.msra.mxu0 0
        %614 = vmatprep.subr.bf16.mxu0 0
        %615 = vmatpush1.bf16.msra.mxu0 0
        %616 = vmatprep.subr.bf16.mxu0 0
        %617 = vmatpush1.bf16.msra.mxu0 0
        %618 = vmatprep.subr.bf16.mxu0 0
        %619 = vmatpush1.bf16.msra.mxu0 0
        %620 = vmatprep.subr.bf16.mxu0 0
        %621 = vmatpush1.bf16.msra.mxu0 0
        %622 = vmatprep.subr.bf16.mxu0 0
        %623 = vmatpush1.bf16.msra.mxu0 0
        %624 = vmatprep.subr.bf16.mxu0 0
        %625 = vmatpush1.bf16.msra.mxu0 0
        %626 = vmatprep.subr.bf16.mxu0 0
        %627 = vmatpush1.bf16.msra.mxu0 0
        %628 = vmatprep.subr.bf16.mxu0 0
        %629 = vmatpush1.bf16.msra.mxu0 0
        %630 = vmatprep.subr.bf16.mxu0 0
        %631 = vmatpush1.bf16.msra.mxu0 0
        %632 = vmatprep.mubr.bf16.mxu0 0
        %633 = vmatmul.mubr.bf16.gmra.mrb[0].mxu0 %v598
        %v634 = vpop.f32.mrb[0].mxu0
        %v635 = vadd.f32 0.0, %v634
        %v636 = vpop.f32.mrb[0].mxu0
        %v637 = vpop.f32.mrb[0].mxu0
        %v638 = vpop.f32.mrb[0].mxu0
        %639 = vdwg.mxu0
        %v640 = vadd.f32 %v583, %v635
        %v641 = vxor.u32 %v640, 2147483648
        %v642 = vmul.f32 %v641, 1.442695
        %v643 = vpow.pop %v642
        %v644 = vadd.f32 %v643, 1.0
        %v645 = vrcp.pop %v644
        %v646 = vmul.f32 1.0, %v645
        %v647 = vtanh.pop %v640
        %v648 = vmul.f32 %v646, 0.0
        %650 = vrot.lane.b32.xlu0 %v647, 32
        %v651 = vpop.permute.xlu0 %650
        %v653 = vmul.f32 %v646, %v651
        %655 = vrot.lane.b32.xlu0 %v653, 32
        %v656 = vpop.permute.xlu0 %655
        %v658 = vadd.f32 %v648, %v656
        %v659 = vtanh.pop %v658
        %661 = vrot.lane.b32.xlu0 %v659, 32
        %v662 = vpop.permute.xlu0 %661
        %v664 = vmul.f32 %v646, %v662
        // Predicated region
        $region57: #{fflstm_encoder1_forward.1} parent=47 // pred_check
          %p665 = pneg %p582
        $region58: #{fflstm_encoder1_forward.1} parent=47 // pred_check_branch
          %667 = sbr.rel (%p665) target = $region60
        $region59: #{fflstm_encoder1_forward.1} parent=47 // pred_region
          %669 = vrot.lane.b32.xlu0 %v664, 64
          %v670 = vpop.permute.xlu0 %669
          %672 = vst.msk [vmem:[#allocation2] sm:$0xff] %vm596, %v670
        $region60: #{fflstm_encoder1_forward.1} parent=47 // pred_fallthru
          _
        %s673 = scalar_lea.vmem [#allocation3], 8
        %v674 = vld [vmem:[%s673] sm:$0xff]
        %v675 = vpack.c.bf16 %v664, %v664
        %677 = vrot.lane.b32.xlu0 %v675, 64
        %v678 = vpop.permute.xlu0 %677
        %v680 = vsel %vm596, %v678, 0
        %682 = vmatprep.subr.bf16.mxu0 0
        %683 = vmatpush1.bf16.msra.mxu0 %v592
        %684 = vmatprep.subr.bf16.mxu0 0
        %685 = vmatpush1.bf16.msra.mxu0 %v593
        %686 = vmatprep.subr.bf16.mxu0 0
        %687 = vmatpush1.bf16.msra.mxu0 0
        %688 = vmatprep.subr.bf16.mxu0 0
        %689 = vmatpush1.bf16.msra.mxu0 0
        %690 = vmatprep.subr.bf16.mxu0 0
        %691 = vmatpush1.bf16.msra.mxu0 0
        %692 = vmatprep.subr.bf16.mxu0 0
        %693 = vmatpush1.bf16.msra.mxu0 0
        %694 = vmatprep.subr.bf16.mxu0 0
        %695 = vmatpush1.bf16.msra.mxu0 0
        %696 = vmatprep.subr.bf16.mxu0 0
        %697 = vmatpush1.bf16.msra.mxu0 0
        %698 = vmatprep.subr.bf16.mxu0 0
        %699 = vmatpush1.bf16.msra.mxu0 0
        %700 = vmatprep.subr.bf16.mxu0 0
        %701 = vmatpush1.bf16.msra.mxu0 0
        %702 = vmatprep.subr.bf16.mxu0 0
        %703 = vmatpush1.bf16.msra.mxu0 0
        %704 = vmatprep.subr.bf16.mxu0 0
        %705 = vmatpush1.bf16.msra.mxu0 0
        %706 = vmatprep.subr.bf16.mxu0 0
        %707 = vmatpush1.bf16.msra.mxu0 0
        %708 = vmatprep.subr.bf16.mxu0 0
        %709 = vmatpush1.bf16.msra.mxu0 0
        %710 = vmatprep.subr.bf16.mxu0 0
        %711 = vmatpush1.bf16.msra.mxu0 0
        %712 = vmatprep.subr.bf16.mxu0 0
        %713 = vmatpush1.bf16.msra.mxu0 0
        %714 = vmatprep.mubr.bf16.mxu0 0
        %715 = vmatmul.mubr.bf16.gmra.mrb[0].mxu0 %v680
        %v716 = vpop.f32.mrb[0].mxu0
        %v717 = vadd.f32 0.0, %v716
        %v718 = vpop.f32.mrb[0].mxu0
        %v719 = vpop.f32.mrb[0].mxu0
        %v720 = vpop.f32.mrb[0].mxu0
        %721 = vdwg.mxu0
        %v722 = vadd.f32 %v674, %v717
        %v723 = vxor.u32 %v722, 2147483648
        %v724 = vmul.f32 %v723, 1.442695
        %v725 = vpow.pop %v724
        %v726 = vadd.f32 %v725, 1.0
        %v727 = vrcp.pop %v726
        %v728 = vmul.f32 1.0, %v727
        %v729 = vtanh.pop %v722
        %v730 = vmul.f32 %v728, %v658
        %732 = vrot.lane.b32.xlu0 %v729, 32
        %v733 = vpop.permute.xlu0 %732
        %v735 = vmul.f32 %v728, %v733
        %737 = vrot.lane.b32.xlu0 %v735, 32
        %v738 = vpop.permute.xlu0 %737
        %v740 = vadd.f32 %v730, %v738
        %v741 = vtanh.pop %v740
        %743 = vrot.lane.b32.xlu0 %v741, 32
        %v744 = vpop.permute.xlu0 %743
        %v746 = vmul.f32 %v728, %v744
        // Predicated region
        $region61: #{fflstm_encoder1_forward.1} parent=47 // pred_check
          %p747 = pneg %p582
        $region62: #{fflstm_encoder1_forward.1} parent=47 // pred_check_branch
          %749 = sbr.rel (%p747) target = $region64
        $region63: #{fflstm_encoder1_forward.1} parent=47 // pred_region
          %751 = vrot.lane.b32.xlu0 %v746, 64
          %v752 = vpop.permute.xlu0 %751
          %s754 = scalar_lea.vmem [#allocation2], 8
          %755 = vst.msk [vmem:[%s754] sm:$0xff] %vm596, %v752
        $region64: #{fflstm_encoder1_forward.1} parent=47 // pred_fallthru
          _
        %s756 = scalar_lea.vmem [#allocation3], 16
        %v757 = vld [vmem:[%s756] sm:$0xff]
        %v758 = vpack.c.bf16 %v746, %v746
        %760 = vrot.lane.b32.xlu0 %v758, 64
        %v761 = vpop.permute.xlu0 %760
        %v763 = vsel %vm596, %v761, 0
        %765 = vmatprep.subr.bf16.mxu0 0
        %766 = vmatpush1.bf16.msra.mxu0 %v592
        %767 = vmatprep.subr.bf16.mxu0 0
        %768 = vmatpush1.bf16.msra.mxu0 %v593
        %769 = vmatprep.subr.bf16.mxu0 0
        %770 = vmatpush1.bf16.msra.mxu0 0
        %771 = vmatprep.subr.bf16.mxu0 0
        %772 = vmatpush1.bf16.msra.mxu0 0
        %773 = vmatprep.subr.bf16.mxu0 0
        %774 = vmatpush1.bf16.msra.mxu0 0
        %775 = vmatprep.subr.bf16.mxu0 0
        %776 = vmatpush1.bf16.msra.mxu0 0
        %777 = vmatprep.subr.bf16.mxu0 0
        %778 = vmatpush1.bf16.msra.mxu0 0
        %779 = vmatprep.subr.bf16.mxu0 0
        %780 = vmatpush1.bf16.msra.mxu0 0
        %781 = vmatprep.subr.bf16.mxu0 0
        %782 = vmatpush1.bf16.msra.mxu0 0
        %783 = vmatprep.subr.bf16.mxu0 0
        %784 = vmatpush1.bf16.msra.mxu0 0
        %785 = vmatprep.subr.bf16.mxu0 0
        %786 = vmatpush1.bf16.msra.mxu0 0
        %787 = vmatprep.subr.bf16.mxu0 0
        %788 = vmatpush1.bf16.msra.mxu0 0
        %789 = vmatprep.subr.bf16.mxu0 0
        %790 = vmatpush1.bf16.msra.mxu0 0
        %791 = vmatprep.subr.bf16.mxu0 0
        %792 = vmatpush1.bf16.msra.mxu0 0
        %793 = vmatprep.subr.bf16.mxu0 0
        %794 = vmatpush1.bf16.msra.mxu0 0
        %795 = vmatprep.subr.bf16.mxu0 0
        %796 = vmatpush1.bf16.msra.mxu0 0
        %797 = vmatprep.mubr.bf16.mxu0 0
        %798 = vmatmul.mubr.bf16.gmra.mrb[0].mxu0 %v763
        %v799 = vpop.f32.mrb[0].mxu0
        %v800 = vadd.f32 0.0, %v799
        %v801 = vpop.f32.mrb[0].mxu0
        %v802 = vpop.f32.mrb[0].mxu0
        %v803 = vpop.f32.mrb[0].mxu0
        %804 = vdwg.mxu0
        %v805 = vadd.f32 %v757, %v800
        %v806 = vxor.u32 %v805, 2147483648
        %v807 = vmul.f32 %v806, 1.442695
        %v808 = vpow.pop %v807
        %v809 = vadd.f32 %v808, 1.0
        %v810 = vrcp.pop %v809
        %v811 = vmul.f32 1.0, %v810
        %v812 = vtanh.pop %v805
        %v813 = vmul.f32 %v811, %v740
        %815 = vrot.lane.b32.xlu0 %v812, 32
        %v816 = vpop.permute.xlu0 %815
        %v818 = vmul.f32 %v811, %v816
        %820 = vrot.lane.b32.xlu0 %v818, 32
        %v821 = vpop.permute.xlu0 %820
        %v823 = vadd.f32 %v813, %v821
        %v824 = vtanh.pop %v823
        %826 = vrot.lane.b32.xlu0 %v824, 32
        %v827 = vpop.permute.xlu0 %826
        %v829 = vmul.f32 %v811, %v827
        // Predicated region
        $region65: #{fflstm_encoder1_forward.1} parent=47 // pred_check
          %p830 = pneg %p582
        $region66: #{fflstm_encoder1_forward.1} parent=47 // pred_check_branch
          %832 = sbr.rel (%p830) target = $region68
        $region67: #{fflstm_encoder1_forward.1} parent=47 // pred_region
          %834 = vrot.lane.b32.xlu0 %v829, 64
          %v835 = vpop.permute.xlu0 %834
          %s837 = scalar_lea.vmem [#allocation2], 16
          %838 = vst.msk [vmem:[%s837] sm:$0xff] %vm596, %v835
        $region68: #{fflstm_encoder1_forward.1} parent=47 // pred_fallthru
          _
        %s839 = scalar_lea.vmem [#allocation3], 24
        %v840 = vld [vmem:[%s839] sm:$0xff]
        %v841 = vpack.c.bf16 %v829, %v829
        %843 = vrot.lane.b32.xlu0 %v841, 64
        %v844 = vpop.permute.xlu0 %843
        %v846 = vsel %vm596, %v844, 0
        %848 = vmatprep.subr.bf16.mxu0 0
        %849 = vmatpush1.bf16.msra.mxu0 %v592
        %850 = vmatprep.subr.bf16.mxu0 0
        %851 = vmatpush1.bf16.msra.mxu0 %v593
        %852 = vmatprep.subr.bf16.mxu0 0
        %853 = vmatpush1.bf16.msra.mxu0 0
        %854 = vmatprep.subr.bf16.mxu0 0
        %855 = vmatpush1.bf16.msra.mxu0 0
        %856 = vmatprep.subr.bf16.mxu0 0
        %857 = vmatpush1.bf16.msra.mxu0 0
        %858 = vmatprep.subr.bf16.mxu0 0
        %859 = vmatpush1.bf16.msra.mxu0 0
        %860 = vmatprep.subr.bf16.mxu0 0
        %861 = vmatpush1.bf16.msra.mxu0 0
        %862 = vmatprep.subr.bf16.mxu0 0
        %863 = vmatpush1.bf16.msra.mxu0 0
        %864 = vmatprep.subr.bf16.mxu0 0
        %865 = vmatpush1.bf16.msra.mxu0 0
        %866 = vmatprep.subr.bf16.mxu0 0
        %867 = vmatpush1.bf16.msra.mxu0 0
        %868 = vmatprep.subr.bf16.mxu0 0
        %869 = vmatpush1.bf16.msra.mxu0 0
        %870 = vmatprep.subr.bf16.mxu0 0
        %871 = vmatpush1.bf16.msra.mxu0 0
        %872 = vmatprep.subr.bf16.mxu0 0
        %873 = vmatpush1.bf16.msra.mxu0 0
        %874 = vmatprep.subr.bf16.mxu0 0
        %875 = vmatpush1.bf16.msra.mxu0 0
        %876 = vmatprep.subr.bf16.mxu0 0
        %877 = vmatpush1.bf16.msra.mxu0 0
        %878 = vmatprep.subr.bf16.mxu0 0
        %879 = vmatpush1.bf16.msra.mxu0 0
        %880 = vmatprep.mubr.bf16.mxu0 0
        %881 = vmatmul.mubr.bf16.gmra.mrb[0].mxu0 %v846
        %v882 = vpop.f32.mrb[0].mxu0
        %v883 = vadd.f32 0.0, %v882
        %v884 = vpop.f32.mrb[0].mxu0
        %v885 = vpop.f32.mrb[0].mxu0
        %v886 = vpop.f32.mrb[0].mxu0
        %887 = vdwg.mxu0
        %v888 = vadd.f32 %v840, %v883
        %v889 = vxor.u32 %v888, 2147483648
        %v890 = vmul.f32 %v889, 1.442695
        %v891 = vpow.pop %v890
        %v892 = vadd.f32 %v891, 1.0
        %v893 = vrcp.pop %v892
        %v894 = vmul.f32 1.0, %v893
        %v895 = vtanh.pop %v888
        %v896 = vmul.f32 %v894, %v823
        %898 = vrot.lane.b32.xlu0 %v895, 32
        %v899 = vpop.permute.xlu0 %898
        %v901 = vmul.f32 %v894, %v899
        %903 = vrot.lane.b32.xlu0 %v901, 32
        %v904 = vpop.permute.xlu0 %903
        %v906 = vadd.f32 %v896, %v904
        %v907 = vtanh.pop %v906
        %909 = vrot.lane.b32.xlu0 %v907, 32
        %v910 = vpop.permute.xlu0 %909
        %v912 = vmul.f32 %v894, %v910
        // Predicated region
        $region69: #{fflstm_encoder1_forward.1} parent=47 // pred_check
          %p913 = pneg %p582
        $region70: #{fflstm_encoder1_forward.1} parent=47 // pred_check_branch
          %915 = sbr.rel (%p913) target = $region72
        $region71: #{fflstm_encoder1_forward.1} parent=47 // pred_region
          %917 = vrot.lane.b32.xlu0 %v912, 64
          %v918 = vpop.permute.xlu0 %917
          %s920 = scalar_lea.vmem [#allocation2], 24
          %921 = vst.msk [vmem:[%s920] sm:$0xff] %vm596, %v918
        $region72: #{fflstm_encoder1_forward.1} parent=47 // pred_fallthru
          _
        %s922 = scalar_lea.vmem [#allocation3], 32
        %v923 = vld [vmem:[%s922] sm:$0xff]
        %v924 = vpack.c.bf16 %v912, %v912
        %926 = vrot.lane.b32.xlu0 %v924, 64
        %v927 = vpop.permute.xlu0 %926
        %v929 = vsel %vm596, %v927, 0
        %931 = vmatprep.subr.bf16.mxu0 0
        %932 = vmatpush1.bf16.msra.mxu0 %v592
        %933 = vmatprep.subr.bf16.mxu0 0
        %934 = vmatpush1.bf16.msra.mxu0 %v593
        %935 = vmatprep.subr.bf16.mxu0 0
        %936 = vmatpush1.bf16.msra.mxu0 0
        %937 = vmatprep.subr.bf16.mxu0 0
        %938 = vmatpush1.bf16.msra.mxu0 0
        %939 = vmatprep.subr.bf16.mxu0 0
        %940 = vmatpush1.bf16.msra.mxu0 0
        %941 = vmatprep.subr.bf16.mxu0 0
        %942 = vmatpush1.bf16.msra.mxu0 0
        %943 = vmatprep.subr.bf16.mxu0 0
        %944 = vmatpush1.bf16.msra.mxu0 0
        %945 = vmatprep.subr.bf16.mxu0 0
        %946 = vmatpush1.bf16.msra.mxu0 0
        %947 = vmatprep.subr.bf16.mxu0 0
        %948 = vmatpush1.bf16.msra.mxu0 0
        %949 = vmatprep.subr.bf16.mxu0 0
        %950 = vmatpush1.bf16.msra.mxu0 0
        %951 = vmatprep.subr.bf16.mxu0 0
        %952 = vmatpush1.bf16.msra.mxu0 0
        %953 = vmatprep.subr.bf16.mxu0 0
        %954 = vmatpush1.bf16.msra.mxu0 0
        %955 = vmatprep.subr.bf16.mxu0 0
        %956 = vmatpush1.bf16.msra.mxu0 0
        %957 = vmatprep.subr.bf16.mxu0 0
        %958 = vmatpush1.bf16.msra.mxu0 0
        %959 = vmatprep.subr.bf16.mxu0 0
        %960 = vmatpush1.bf16.msra.mxu0 0
        %961 = vmatprep.subr.bf16.mxu0 0
        %962 = vmatpush1.bf16.msra.mxu0 0
        %963 = vmatprep.mubr.bf16.mxu0 0
        %964 = vmatmul.mubr.bf16.gmra.mrb[0].mxu0 %v929
        %v965 = vpop.f32.mrb[0].mxu0
        %v966 = vadd.f32 0.0, %v965
        %v967 = vpop.f32.mrb[0].mxu0
        %v968 = vpop.f32.mrb[0].mxu0
        %v969 = vpop.f32.mrb[0].mxu0
        %970 = vdwg.mxu0
        %v971 = vadd.f32 %v923, %v966
        %v972 = vxor.u32 %v971, 2147483648
        %v973 = vmul.f32 %v972, 1.442695
        %v974 = vpow.pop %v973
        %v975 = vadd.f32 %v974, 1.0
        %v976 = vrcp.pop %v975
        %v977 = vmul.f32 1.0, %v976
        %v978 = vtanh.pop %v971
        %v979 = vmul.f32 %v977, %v906
        %981 = vrot.lane.b32.xlu0 %v978, 32
        %v982 = vpop.permute.xlu0 %981
        %v984 = vmul.f32 %v977, %v982
        %986 = vrot.lane.b32.xlu0 %v984, 32
        %v987 = vpop.permute.xlu0 %986
        %v989 = vadd.f32 %v979, %v987
        %v990 = vtanh.pop %v989
        %992 = vrot.lane.b32.xlu0 %v990, 32
        %v993 = vpop.permute.xlu0 %992
        %v995 = vmul.f32 %v977, %v993
        // Predicated region
        $region73: #{fflstm_encoder1_forward.1} parent=47 // pred_check
          %p996 = pneg %p582
        $region74: #{fflstm_encoder1_forward.1} parent=47 // pred_check_branch
          %998 = sbr.rel (%p996) target = $region76
        $region75: #{fflstm_encoder1_forward.1} parent=47 // pred_region
          %1000 = vrot.lane.b32.xlu0 %v995, 64
          %v1001 = vpop.permute.xlu0 %1000
          %s1003 = scalar_lea.vmem [#allocation2], 32
          %1004 = vst.msk [vmem:[%s1003] sm:$0xff] %vm596, %v1001
        $region76: #{fflstm_encoder1_forward.1} parent=47 // pred_fallthru
          _
        %s1005 = scalar_lea.vmem [#allocation3], 40
        %v1006 = vld [vmem:[%s1005] sm:$0xff]
        %v1007 = vpack.c.bf16 %v995, %v995
        %1009 = vrot.lane.b32.xlu0 %v1007, 64
        %v1010 = vpop.permute.xlu0 %1009
        %v1012 = vsel %vm596, %v1010, 0
        %1014 = vmatprep.subr.bf16.mxu0 0
        %1015 = vmatpush1.bf16.msra.mxu0 %v592
        %1016 = vmatprep.subr.bf16.mxu0 0
        %1017 = vmatpush1.bf16.msra.mxu0 %v593
        %1018 = vmatprep.subr.bf16.mxu0 0
        %1019 = vmatpush1.bf16.msra.mxu0 0
        %1020 = vmatprep.subr.bf16.mxu0 0
        %1021 = vmatpush1.bf16.msra.mxu0 0
        %1022 = vmatprep.subr.bf16.mxu0 0
        %1023 = vmatpush1.bf16.msra.mxu0 0
        %1024 = vmatprep.subr.bf16.mxu0 0
        %1025 = vmatpush1.bf16.msra.mxu0 0
        %1026 = vmatprep.subr.bf16.mxu0 0
        %1027 = vmatpush1.bf16.msra.mxu0 0
        %1028 = vmatprep.subr.bf16.mxu0 0
        %1029 = vmatpush1.bf16.msra.mxu0 0
        %1030 = vmatprep.subr.bf16.mxu0 0
        %1031 = vmatpush1.bf16.msra.mxu0 0
        %1032 = vmatprep.subr.bf16.mxu0 0
        %1033 = vmatpush1.bf16.msra.mxu0 0
        %1034 = vmatprep.subr.bf16.mxu0 0
        %1035 = vmatpush1.bf16.msra.mxu0 0
        %1036 = vmatprep.subr.bf16.mxu0 0
        %1037 = vmatpush1.bf16.msra.mxu0 0
        %1038 = vmatprep.subr.bf16.mxu0 0
        %1039 = vmatpush1.bf16.msra.mxu0 0
        %1040 = vmatprep.subr.bf16.mxu0 0
        %1041 = vmatpush1.bf16.msra.mxu0 0
        %1042 = vmatprep.subr.bf16.mxu0 0
        %1043 = vmatpush1.bf16.msra.mxu0 0
        %1044 = vmatprep.subr.bf16.mxu0 0
        %1045 = vmatpush1.bf16.msra.mxu0 0
        %1046 = vmatprep.mubr.bf16.mxu0 0
        %1047 = vmatmul.mubr.bf16.gmra.mrb[0].mxu0 %v1012
        %v1048 = vpop.f32.mrb[0].mxu0
        %v1049 = vadd.f32 0.0, %v1048
        %v1050 = vpop.f32.mrb[0].mxu0
        %v1051 = vpop.f32.mrb[0].mxu0
        %v1052 = vpop.f32.mrb[0].mxu0
        %1053 = vdwg.mxu0
        %v1054 = vadd.f32 %v1006, %v1049
        %v1055 = vxor.u32 %v1054, 2147483648
        %v1056 = vmul.f32 %v1055, 1.442695
        %v1057 = vpow.pop %v1056
        %v1058 = vadd.f32 %v1057, 1.0
        %v1059 = vrcp.pop %v1058
        %v1060 = vmul.f32 1.0, %v1059
        %v1061 = vtanh.pop %v1054
        %v1062 = vmul.f32 %v1060, %v989
        %1064 = vrot.lane.b32.xlu0 %v1061, 32
        %v1065 = vpop.permute.xlu0 %1064
        %v1067 = vmul.f32 %v1060, %v1065
        %1069 = vrot.lane.b32.xlu0 %v1067, 32
        %v1070 = vpop.permute.xlu0 %1069
        %v1072 = vadd.f32 %v1062, %v1070
        %v1073 = vtanh.pop %v1072
        %1075 = vrot.lane.b32.xlu0 %v1073, 32
        %v1076 = vpop.permute.xlu0 %1075
        %v1078 = vmul.f32 %v1060, %v1076
        // Predicated region
        $region77: #{fflstm_encoder1_forward.1} parent=47 // pred_check
          %p1079 = pneg %p582
        $region78: #{fflstm_encoder1_forward.1} parent=47 // pred_check_branch
          %1081 = sbr.rel (%p1079) target = $region80
        $region79: #{fflstm_encoder1_forward.1} parent=47 // pred_region
          %1083 = vrot.lane.b32.xlu0 %v1078, 64
          %v1084 = vpop.permute.xlu0 %1083
          %s1086 = scalar_lea.vmem [#allocation2], 40
          %1087 = vst.msk [vmem:[%s1086] sm:$0xff] %vm596, %v1084
        $region80: #{fflstm_encoder1_forward.1} parent=47 // pred_fallthru
          _
        %s1088 = scalar_lea.vmem [#allocation3], 48
        %v1089 = vld [vmem:[%s1088] sm:$0xff]
        %v1090 = vpack.c.bf16 %v1078, %v1078
        %1092 = vrot.lane.b32.xlu0 %v1090, 64
        %v1093 = vpop.permute.xlu0 %1092
        %v1095 = vsel %vm596, %v1093, 0
        %1097 = vmatprep.subr.bf16.mxu0 0
        %1098 = vmatpush1.bf16.msra.mxu0 %v592
        %1099 = vmatprep.subr.bf16.mxu0 0
        %1100 = vmatpush1.bf16.msra.mxu0 %v593
        %1101 = vmatprep.subr.bf16.mxu0 0
        %1102 = vmatpush1.bf16.msra.mxu0 0
        %1103 = vmatprep.subr.bf16.mxu0 0
        %1104 = vmatpush1.bf16.msra.mxu0 0
        %1105 = vmatprep.subr.bf16.mxu0 0
        %1106 = vmatpush1.bf16.msra.mxu0 0
        %1107 = vmatprep.subr.bf16.mxu0 0
        %1108 = vmatpush1.bf16.msra.mxu0 0
        %1109 = vmatprep.subr.bf16.mxu0 0
        %1110 = vmatpush1.bf16.msra.mxu0 0
        %1111 = vmatprep.subr.bf16.mxu0 0
        %1112 = vmatpush1.bf16.msra.mxu0 0
        %1113 = vmatprep.subr.bf16.mxu0 0
        %1114 = vmatpush1.bf16.msra.mxu0 0
        %1115 = vmatprep.subr.bf16.mxu0 0
        %1116 = vmatpush1.bf16.msra.mxu0 0
        %1117 = vmatprep.subr.bf16.mxu0 0
        %1118 = vmatpush1.bf16.msra.mxu0 0
        %1119 = vmatprep.subr.bf16.mxu0 0
        %1120 = vmatpush1.bf16.msra.mxu0 0
        %1121 = vmatprep.subr.bf16.mxu0 0
        %1122 = vmatpush1.bf16.msra.mxu0 0
        %1123 = vmatprep.subr.bf16.mxu0 0
        %1124 = vmatpush1.bf16.msra.mxu0 0
        %1125 = vmatprep.subr.bf16.mxu0 0
        %1126 = vmatpush1.bf16.msra.mxu0 0
        %1127 = vmatprep.subr.bf16.mxu0 0
        %1128 = vmatpush1.bf16.msra.mxu0 0
        %1129 = vmatprep.mubr.bf16.mxu0 0
        %1130 = vmatmul.mubr.bf16.gmra.mrb[0].mxu0 %v1095
        %v1131 = vpop.f32.mrb[0].mxu0
        %v1132 = vadd.f32 0.0, %v1131
        %v1133 = vpop.f32.mrb[0].mxu0
        %v1134 = vpop.f32.mrb[0].mxu0
        %v1135 = vpop.f32.mrb[0].mxu0
        %1136 = vdwg.mxu0
        %v1137 = vadd.f32 %v1089, %v1132
        %v1138 = vxor.u32 %v1137, 2147483648
        %v1139 = vmul.f32 %v1138, 1.442695
        %v1140 = vpow.pop %v1139
        %v1141 = vadd.f32 %v1140, 1.0
        %v1142 = vrcp.pop %v1141
        %v1143 = vmul.f32 1.0, %v1142
        %v1144 = vtanh.pop %v1137
        %v1145 = vmul.f32 %v1143, %v1072
        %1147 = vrot.lane.b32.xlu0 %v1144, 32
        %v1148 = vpop.permute.xlu0 %1147
        %v1150 = vmul.f32 %v1143, %v1148
        %1152 = vrot.lane.b32.xlu0 %v1150, 32
        %v1153 = vpop.permute.xlu0 %1152
        %v1155 = vadd.f32 %v1145, %v1153
        %v1156 = vtanh.pop %v1155
        %1158 = vrot.lane.b32.xlu0 %v1156, 32
        %v1159 = vpop.permute.xlu0 %1158
        %v1161 = vmul.f32 %v1143, %v1159
        // Predicated region
        $region81: #{fflstm_encoder1_forward.1} parent=47 // pred_check
          %p1162 = pneg %p582
        $region82: #{fflstm_encoder1_forward.1} parent=47 // pred_check_branch
          %1164 = sbr.rel (%p1162) target = $region84
        $region83: #{fflstm_encoder1_forward.1} parent=47 // pred_region
          %1166 = vrot.lane.b32.xlu0 %v1161, 64
          %v1167 = vpop.permute.xlu0 %1166
          %s1169 = scalar_lea.vmem [#allocation2], 48
          %1170 = vst.msk [vmem:[%s1169] sm:$0xff] %vm596, %v1167
        $region84: #{fflstm_encoder1_forward.1} parent=47 // pred_fallthru
          _
        %s1171 = scalar_lea.vmem [#allocation3], 56
        %v1172 = vld [vmem:[%s1171] sm:$0xff]
        %v1173 = vpack.c.bf16 %v1161, %v1161
        %1175 = vrot.lane.b32.xlu0 %v1173, 64
        %v1176 = vpop.permute.xlu0 %1175
        %v1178 = vsel %vm596, %v1176, 0
        %1180 = vmatprep.subr.bf16.mxu0 0
        %1181 = vmatpush1.bf16.msra.mxu0 %v592
        %1182 = vmatprep.subr.bf16.mxu0 0
        %1183 = vmatpush1.bf16.msra.mxu0 %v593
        %1184 = vmatprep.subr.bf16.mxu0 0
        %1185 = vmatpush1.bf16.msra.mxu0 0
        %1186 = vmatprep.subr.bf16.mxu0 0
        %1187 = vmatpush1.bf16.msra.mxu0 0
        %1188 = vmatprep.subr.bf16.mxu0 0
        %1189 = vmatpush1.bf16.msra.mxu0 0
        %1190 = vmatprep.subr.bf16.mxu0 0
        %1191 = vmatpush1.bf16.msra.mxu0 0
        %1192 = vmatprep.subr.bf16.mxu0 0
        %1193 = vmatpush1.bf16.msra.mxu0 0
        %1194 = vmatprep.subr.bf16.mxu0 0
        %1195 = vmatpush1.bf16.msra.mxu0 0
        %1196 = vmatprep.subr.bf16.mxu0 0
        %1197 = vmatpush1.bf16.msra.mxu0 0
        %1198 = vmatprep.subr.bf16.mxu0 0
        %1199 = vmatpush1.bf16.msra.mxu0 0
        %1200 = vmatprep.subr.bf16.mxu0 0
        %1201 = vmatpush1.bf16.msra.mxu0 0
        %1202 = vmatprep.subr.bf16.mxu0 0
        %1203 = vmatpush1.bf16.msra.mxu0 0
        %1204 = vmatprep.subr.bf16.mxu0 0
        %1205 = vmatpush1.bf16.msra.mxu0 0
        %1206 = vmatprep.subr.bf16.mxu0 0
        %1207 = vmatpush1.bf16.msra.mxu0 0
        %1208 = vmatprep.subr.bf16.mxu0 0
        %1209 = vmatpush1.bf16.msra.mxu0 0
        %1210 = vmatprep.subr.bf16.mxu0 0
        %1211 = vmatpush1.bf16.msra.mxu0 0
        %1212 = vmatprep.mubr.bf16.mxu0 0
        %1213 = vmatmul.mubr.bf16.gmra.mrb[0].mxu0 %v1178
        %v1214 = vpop.f32.mrb[0].mxu0
        %v1215 = vadd.f32 0.0, %v1214
        %v1216 = vpop.f32.mrb[0].mxu0
        %v1217 = vpop.f32.mrb[0].mxu0
        %v1218 = vpop.f32.mrb[0].mxu0
        %1219 = vdwg.mxu0
        %v1220 = vadd.f32 %v1172, %v1215
        %v1221 = vxor.u32 %v1220, 2147483648
        %v1222 = vmul.f32 %v1221, 1.442695
        %v1223 = vpow.pop %v1222
        %v1224 = vadd.f32 %v1223, 1.0
        %v1225 = vrcp.pop %v1224
        %v1226 = vmul.f32 1.0, %v1225
        %v1227 = vtanh.pop %v1220
        %v1228 = vmul.f32 %v1226, %v1155
        %1230 = vrot.lane.b32.xlu0 %v1227, 32
        %v1231 = vpop.permute.xlu0 %1230
        %v1233 = vmul.f32 %v1226, %v1231
        %1235 = vrot.lane.b32.xlu0 %v1233, 32
        %v1236 = vpop.permute.xlu0 %1235
        %v1238 = vadd.f32 %v1228, %v1236
        %v1239 = vtanh.pop %v1238
        %1241 = vrot.lane.b32.xlu0 %v1239, 32
        %v1242 = vpop.permute.xlu0 %1241
        %v1244 = vmul.f32 %v1226, %v1242
        // Predicated region
        $region85: #{fflstm_encoder1_forward.1} parent=47 // pred_check
          %p1245 = pneg %p582
        $region86: #{fflstm_encoder1_forward.1} parent=47 // pred_check_branch
          %1247 = sbr.rel (%p1245) target = $region88
        $region87: #{fflstm_encoder1_forward.1} parent=47 // pred_region
          %1249 = vrot.lane.b32.xlu0 %v1244, 64
          %v1250 = vpop.permute.xlu0 %1249
          %s1252 = scalar_lea.vmem [#allocation2], 56
          %1253 = vst.msk [vmem:[%s1252] sm:$0xff] %vm596, %v1250
        $region88: #{fflstm_encoder1_forward.1} parent=47 // pred_fallthru
          _
        %p1254 = scmp.eq.s32.totalorder %s19, 1
        // Predicated region
        $region89: #{fflstm_encoder1_forward.1} parent=47 // pred_check
          %p1255 = pneg %p1254
        $region90: #{fflstm_encoder1_forward.1} parent=47 // pred_check_branch
          %1257 = sbr.rel (%p1255) target = $region92
        $region91: #{fflstm_encoder1_forward.1} parent=47 // pred_region
          %v1258 = vpack.c.bf16 %v1244, %v1244
          %v1259 = vld [vmem:[%s5] sm:$0xf]
          %v1260 = vld [vmem:[%s5 + $0x4] sm:$0xf]
          %v1261 = vld [vmem:[%s5 + $0x8] sm:$0xf]
          %v1262 = vld [vmem:[%s5 + $0xc] sm:$0xf]
          %v1263 = vld [vmem:[%s6] sm:$0x1]
          %v1265 = vlaneseq
          %v1266 = vshrl.u32 %v1265, 7
          %v1267 = vsub.s32 0, %v1266
          %v1268 = vrot.slane %v1263, %v1267
          %1271 = vrot.lane.b32.xlu0 %v1258, 64
          %v1272 = vpop.permute.xlu0 %1271
          %v1277 = vunpack.c.l.b16 %v1259
          %v1278 = vunpack.c.l.b16 %v1260
          %v1279 = vunpack.c.l.b16 %v1261
          %v1280 = vunpack.c.l.b16 %v1262
          %v1281 = vpack.c.b16 %v1278, %v1277
          %v1282 = vpack.c.b16 %v1280, %v1279
          %v1286 = vsel %vm596, %v1272, 0
          %1288 = vmatprep.subr.bf16.mxu0 0
          %1289 = vmatpush1.bf16.msra.mxu0 %v1281
          %1290 = vmatprep.subr.bf16.mxu0 0
          %1291 = vmatpush1.bf16.msra.mxu0 %v1282
          %1292 = vmatprep.subr.bf16.mxu0 0
          %1293 = vmatpush1.bf16.msra.mxu0 0
          %1294 = vmatprep.subr.bf16.mxu0 0
          %1295 = vmatpush1.bf16.msra.mxu0 0
          %1296 = vmatprep.subr.bf16.mxu0 0
          %1297 = vmatpush1.bf16.msra.mxu0 0
          %1298 = vmatprep.subr.bf16.mxu0 0
          %1299 = vmatpush1.bf16.msra.mxu0 0
          %1300 = vmatprep.subr.bf16.mxu0 0
          %1301 = vmatpush1.bf16.msra.mxu0 0
          %1302 = vmatprep.subr.bf16.mxu0 0
          %1303 = vmatpush1.bf16.msra.mxu0 0
          %1304 = vmatprep.subr.bf16.mxu0 0
          %1305 = vmatpush1.bf16.msra.mxu0 0
          %1306 = vmatprep.subr.bf16.mxu0 0
          %1307 = vmatpush1.bf16.msra.mxu0 0
          %1308 = vmatprep.subr.bf16.mxu0 0
          %1309 = vmatpush1.bf16.msra.mxu0 0
          %1310 = vmatprep.subr.bf16.mxu0 0
          %1311 = vmatpush1.bf16.msra.mxu0 0
          %1312 = vmatprep.subr.bf16.mxu0 0
          %1313 = vmatpush1.bf16.msra.mxu0 0
          %1314 = vmatprep.subr.bf16.mxu0 0
          %1315 = vmatpush1.bf16.msra.mxu0 0
          %1316 = vmatprep.subr.bf16.mxu0 0
          %1317 = vmatpush1.bf16.msra.mxu0 0
          %1318 = vmatprep.subr.bf16.mxu0 0
          %1319 = vmatpush1.bf16.msra.mxu0 0
          %1320 = vmatprep.mubr.bf16.mxu0 0
          %1321 = vmatmul.mubr.bf16.gmra.mrb[0].mxu0 %v1286
          %v1322 = vpop.f32.mrb[0].mxu0
          %v1323 = vadd.f32 %v1268, %v1322
          %v1324 = vpop.f32.mrb[0].mxu0
          %v1325 = vpop.f32.mrb[0].mxu0
          %v1326 = vpop.f32.mrb[0].mxu0
          %1327 = vdwg.mxu0
          %vm1328 = vcmask 74752
          %1329 = vst.msk [vmem:[#allocation4] sm:$0x3] %vm1328, %v1323
        $region92: #{fflstm_encoder1_forward.1} parent=47 // pred_fallthru
          _
        // Predicated region
        $region93: #{fflstm_encoder1_forward.1} parent=47 // pred_check
          %p1330 = pneg %p200
        $region94: #{fflstm_encoder1_forward.1} parent=47 // pred_check_branch
          %1332 = sbr.rel (%p1330) target = $region96
        $region95: #{fflstm_encoder1_forward.1} parent=47 // pred_region
          %s1334 = ssub.s32 32, 32
          %1335 = vsyncadd [#allocation5], %s1334
          %s1337 = sshll.u32 [#allocation4], 4
          %s1338 = int_to_ptr.vmem [resolvable:$true] %s1337
          %1340 = dma.vmem_to_hbm [thread:$0]  %s1338, 32, %s7, [#allocation5]
        $region96: #{fflstm_encoder1_forward.1} parent=47 // pred_fallthru
          _
        // Predicated region
        $region97: #{fflstm_encoder1_forward.1} parent=47 // pred_check
          %p1341 = pneg %p200
        $region98: #{fflstm_encoder1_forward.1} parent=47 // pred_check_branch
          %1343 = sbr.rel (%p1341) target = $region100
        $region99: #{fflstm_encoder1_forward.1} parent=47 // pred_region
          %1344 = dma.done [#allocation5], 32
        $region100: #{fflstm_encoder1_forward.1} parent=47 // pred_fallthru
          _
      $region48: #{fflstm_encoder1_forward.1} parent=5 // pred_fallthru
        _
      %p1345 = scmp.le.s32.totalorder 2, %s14
      // Predicated region
      $region101: #{fflstm_encoder1_forward.1} parent=5 // pred_check
        %p1346 = pneg %p1345
      $region102: #{fflstm_encoder1_forward.1} parent=5 // pred_check_branch
        %1348 = sbr.rel (%p1346) target = $region104
      $region103: #{fflstm_encoder1_forward.1} parent=5 // pred_region
        %s1349 = ssub.s32 %s14, 2
      $region104: #{fflstm_encoder1_forward.1} parent=5 // pred_fallthru
        _
    $region6: #{fflstm_encoder1_forward.1} parent=1 // loop_footer
      %s18 = sadd.s32 1, %s14
    $region7: #{fflstm_encoder1_forward.1} parent=1 // loop_footer_branch
      %13 = sbr.rel target = $region3
    $region8: #{fflstm_encoder1_forward.1} parent=1 // loop_exit
      _
    %1350 = vsyncpa [#allocation5], 1
    %s1351 = scalar_lea.sflag [#allocation5], 1
    %1352 = vsyncpa %s1351, 1

</llo_original>
